<compile_context>
chip_gen: v6e
topology: v6e:2x2x1
jax: 0.10.0
libtpu: 0.0.40
codegen_flags: <defaults>
</compile_context>

<pallas_src>
import math

import jax
import jax.numpy as jnp
from jax.experimental import pallas as pl
from jax.experimental.pallas import tpu as pltpu  # noqa: F401  (TPU backend)

# ---- model hyperparameters (small, consistent with the module) ----
NUM_CLASSES = 4
INPUT_SIZE  = 4
HIDDEN_SIZE = 32
NUM_LAYERS  = 2
BATCH       = 2
SEQ_LEN     = 8

BP = 8     # batch padded to one sublane tile
CP = 128   # output lanes padded to one lane tile


# ----------------- Pallas kernel (whole forward, fused) -----------------

def fused_lstm_fc_kernel(x_ref, wih0_ref, b0_ref, wrec_ref, wih1_ref, b1_ref,
                         fcw_ref, fcb_ref, out_ref):
    TB = x_ref.shape[0]
    H = wih1_ref.shape[0]          # 32
    B = out_ref.shape[0]           # 8 (padded)
    T = TB // B

    wrec = wrec_ref[...]           # (2H, 8H) block-diag of [whh0, whh1]
    wih1 = wih1_ref[...]           # (H, 4H)

    # Lane-constant helpers for the single-tanh gate nonlinearity (hoisted).
    # Gate order [i, f, g, o]; sigmoid(x) = 0.5*tanh(0.5x)+0.5 on i/f/o, tanh on g.
    lane = jax.lax.broadcasted_iota(jnp.int32, (B, 4 * H), 1)
    is_cell_gate = (lane >= 2 * H) & (lane < 3 * H)
    pre  = jnp.where(is_cell_gate, 1.0, 0.5).astype(jnp.float32)   # also the post-scale
    post = jnp.where(is_cell_gate, 0.0, 0.5).astype(jnp.float32)

    def gate_act(g):
        # ONE full-vreg tanh over all 4 gates instead of 3 sigmoids + 1 tanh.
        return jnp.tanh(g * pre) * pre + post

    def cell_update(y, c):
        i_g = y[:, 0 * H:1 * H]
        f_g = y[:, 1 * H:2 * H]
        g_g = y[:, 2 * H:3 * H]
        o_g = y[:, 3 * H:4 * H]
        c_new = f_g * c + i_g * g_g
        h_new = o_g * jnp.tanh(c_new)
        return h_new, c_new

    # ---- layer-0 input GEMM hoisted entirely off the recurrence (one batched matmul) ----
    gx0 = jnp.dot(x_ref[...], wih0_ref[...],
                  preferred_element_type=jnp.float32) + b0_ref[...]        # (T*B, 4H)
    b1b = jnp.broadcast_to(b1_ref[...], (B, 4 * H))                        # hoisted broadcast

    hcat = jnp.zeros((B, 2 * H), jnp.float32)   # [h0 | h1]
    c0 = jnp.zeros((B, H), jnp.float32)
    c1 = jnp.zeros((B, H), jnp.float32)
    h1 = jnp.zeros((B, H), jnp.float32)

    for t in range(T):   # static unroll: full scheduler visibility, no grid overhead
        # One block-diagonal recurrent matmul for both layers:
        #   rec[:, :4H] = h0 @ whh0,  rec[:, 4H:] = h1 @ whh1
        rec = jnp.dot(hcat, wrec, preferred_element_type=jnp.float32)      # (B, 8H)

        # layer 0, step t
        g0 = gx0[t * B:(t + 1) * B, :] + rec[:, :4 * H]
        h0, c0 = cell_update(gate_act(g0), c0)

        # layer 1, step t (only h0 @ wih1 remains on the serial chain)
        g1 = jnp.dot(h0, wih1, preferred_element_type=jnp.float32) + b1b + rec[:, 4 * H:]
        h1, c1 = cell_update(gate_act(g1), c1)

        hcat = jnp.concatenate([h0, h1], axis=1)

    # ---- fc(hidden -> padded 128 lanes) + LeakyReLU(0.01), lane-dense full-tile store ----
    y = jnp.dot(h1, fcw_ref[...], preferred_element_type=jnp.float32) + fcb_ref[...]
    out_ref[...] = jnp.where(y >= 0, y, 0.01 * y).astype(out_ref.dtype)


# ----------------- wrapper -----------------

def _full_spec(shape):
    # Whole-array resident block (no grid).
    return pl.BlockSpec(shape, lambda: (0,) * len(shape))


def model_forward(params, data):
    """data: (B, T, input_size), batch_first like the PyTorch module."""
    B, T, Din = data.shape
    H = HIDDEN_SIZE
    C = NUM_CLASSES

    # time-major, batch padded to BP=8 (one sublane tile), flattened to (T*BP, Din).
    x = jnp.transpose(data, (1, 0, 2)).astype(jnp.float32)                 # (T, B, Din)
    x = jnp.pad(x, ((0, 0), (0, BP - B), (0, 0)))                          # (T, BP, Din)
    x2d = x.reshape(T * BP, Din)

    (w_ih0, w_hh0, b0), (w_ih1, w_hh1, b1) = params["lstm"]

    # Block-diagonal recurrent weights: one (BP,2H)@(2H,8H) MXU issue per step.
    w_rec = jnp.zeros((2 * H, 8 * H), jnp.float32)
    w_rec = w_rec.at[:H, :4 * H].set(w_hh0)
    w_rec = w_rec.at[H:, 4 * H:].set(w_hh1)

    # Lane-dense fc weights/bias (pad num_classes -> 128 lanes with zeros).
    fcw_pad = jnp.zeros((H, CP), jnp.float32).at[:, :C].set(params["fc_w"])
    fcb_pad = jnp.zeros((1, CP), jnp.float32).at[:, :C].set(params["fc_b"])

    out = pl.pallas_call(
        fused_lstm_fc_kernel,
        out_shape=jax.ShapeDtypeStruct((BP, CP), jnp.float32),
        in_specs=[
            _full_spec((T * BP, Din)),
            _full_spec((Din, 4 * H)), _full_spec((1, 4 * H)),
            _full_spec((2 * H, 8 * H)),
            _full_spec((H, 4 * H)),   _full_spec((1, 4 * H)),
            _full_spec((H, CP)),      _full_spec((1, CP)),
        ],
        out_specs=_full_spec((BP, CP)),
    )(x2d, w_ih0, b0, w_rec, w_ih1, b1, fcw_pad, fcb_pad)

    # Padded rows/lanes are discarded here (padded batch rows never mix with real ones).
    return out[:B, :C]


# ----------------- deterministic parameter init -----------------

def init_params(key):
    params = {"lstm": []}
    k_lstm = 1.0 / math.sqrt(HIDDEN_SIZE)
    for layer in range(NUM_LAYERS):
        din = INPUT_SIZE if layer == 0 else HIDDEN_SIZE
        key, k1, k2, k3, k4 = jax.random.split(key, 5)
        w_ih = jax.random.uniform(k1, (din, 4 * HIDDEN_SIZE), jnp.float32, -k_lstm, k_lstm)
        w_hh = jax.random.uniform(k2, (HIDDEN_SIZE, 4 * HIDDEN_SIZE), jnp.float32, -k_lstm, k_lstm)
        b_ih = jax.random.uniform(k3, (1, 4 * HIDDEN_SIZE), jnp.float32, -k_lstm, k_lstm)
        b_hh = jax.random.uniform(k4, (1, 4 * HIDDEN_SIZE), jnp.float32, -k_lstm, k_lstm)
        params["lstm"].append((w_ih, w_hh, b_ih + b_hh))
    k_fc = 1.0 / math.sqrt(HIDDEN_SIZE)
    key, k1, k2 = jax.random.split(key, 3)
    params["fc_w"] = jax.random.uniform(k1, (HIDDEN_SIZE, NUM_CLASSES), jnp.float32, -k_fc, k_fc)
    params["fc_b"] = jax.random.uniform(k2, (1, NUM_CLASSES), jnp.float32, -k_fc, k_fc)
    return params


# ----------------- pure-JAX reference for correctness -----------------

def model_reference(params, data):
    x = jnp.transpose(data, (1, 0, 2)).astype(jnp.float32)
    H = HIDDEN_SIZE
    h = None
    for layer in range(NUM_LAYERS):
        w_ih, w_hh, b = params["lstm"][layer]
        T, B, _ = x.shape
        h = jnp.zeros((B, H), jnp.float32)
        c = jnp.zeros((B, H), jnp.float32)
        outs = []
        for t in range(T):
            g = x[t] @ w_ih + h @ w_hh + b
            i_g = jax.nn.sigmoid(g[:, 0 * H:1 * H])
            f_g = jax.nn.sigmoid(g[:, 1 * H:2 * H])
            g_g = jnp.tanh(g[:, 2 * H:3 * H])
            o_g = jax.nn.sigmoid(g[:, 3 * H:4 * H])
            c = f_g * c + i_g * g_g
            h = o_g * jnp.tanh(c)
            outs.append(h)
        x = jnp.stack(outs)
    y = h @ params["fc_w"] + params["fc_b"]
    return jnp.where(y >= 0, y, 0.01 * y)


if __name__ == "__main__":
    key = jax.random.PRNGKey(0)
    key, pkey, dkey = jax.random.split(key, 3)
    params = init_params(pkey)
    data = jax.random.normal(dkey, (BATCH, SEQ_LEN, INPUT_SIZE), jnp.float32)

    out = model_forward(params, data)
    out = jax.block_until_ready(out)

    ref = model_reference(params, data)
    assert out.shape == (BATCH, NUM_CLASSES)
    assert jnp.allclose(out, ref, atol=1e-5, rtol=1e-5), (out, ref)

    print("KERNEL_OK")
</pallas_src>

<mosaic_0001>
module attributes {stable_mosaic.version = 11 : i64} {
  func.func @fused_lstm_fc_kernel(%arg0: memref<64x4xf32, #tpu.memory_space<vmem>>, %arg1: memref<4x128xf32, #tpu.memory_space<vmem>>, %arg2: memref<1x128xf32, #tpu.memory_space<vmem>>, %arg3: memref<64x256xf32, #tpu.memory_space<vmem>>, %arg4: memref<32x128xf32, #tpu.memory_space<vmem>>, %arg5: memref<1x128xf32, #tpu.memory_space<vmem>>, %arg6: memref<32x128xf32, #tpu.memory_space<vmem>>, %arg7: memref<1x128xf32, #tpu.memory_space<vmem>>, %arg8: memref<8x128xf32, #tpu.memory_space<vmem>>) attributes {dimension_semantics = [], scalar_prefetch = 0 : i64, scratch_operands = 0 : i64, tpu.core_type = #tpu.core_type<tc>} {
    %c0 = arith.constant 0 : index
    %c0_0 = arith.constant 0 : index
    %0 = vector.load %arg3[%c0, %c0_0] : memref<64x256xf32, #tpu.memory_space<vmem>>, vector<64x256xf32>
    %c0_1 = arith.constant 0 : index
    %c0_2 = arith.constant 0 : index
    %1 = vector.load %arg4[%c0_1, %c0_2] : memref<32x128xf32, #tpu.memory_space<vmem>>, vector<32x128xf32>
    %2 = tpu.iota {dimensions = array<i32: 1>} : vector<8x128xi32>
    %c64_i32 = arith.constant 64 : i32
    %3 = vector.broadcast %c64_i32 : i32 to vector<8x128xi32>
    %4 = arith.cmpi sge, %2, %3 : vector<8x128xi32>
    %c96_i32 = arith.constant 96 : i32
    %5 = vector.broadcast %c96_i32 : i32 to vector<8x128xi32>
    %6 = arith.cmpi slt, %2, %5 : vector<8x128xi32>
    %7 = arith.andi %4, %6 : vector<8x128xi1>
    %cst = arith.constant 1.000000e+00 : f32
    %cst_3 = arith.constant 5.000000e-01 : f32
    %8 = vector.broadcast %cst : f32 to vector<8x128xf32>
    %9 = vector.broadcast %cst_3 : f32 to vector<8x128xf32>
    %10 = arith.select %7, %8, %9 : vector<8x128xi1>, vector<8x128xf32>
    %cst_4 = arith.constant 0.000000e+00 : f32
    %cst_5 = arith.constant 5.000000e-01 : f32
    %11 = vector.broadcast %cst_4 : f32 to vector<8x128xf32>
    %12 = vector.broadcast %cst_5 : f32 to vector<8x128xf32>
    %13 = arith.select %7, %11, %12 : vector<8x128xi1>, vector<8x128xf32>
    %c0_6 = arith.constant 0 : index
    %c0_7 = arith.constant 0 : index
    %14 = vector.load %arg0[%c0_6, %c0_7] : memref<64x4xf32, #tpu.memory_space<vmem>>, vector<64x4xf32>
    %c0_8 = arith.constant 0 : index
    %c0_9 = arith.constant 0 : index
    %15 = vector.load %arg1[%c0_8, %c0_9] : memref<4x128xf32, #tpu.memory_space<vmem>>, vector<4x128xf32>
    %cst_10 = arith.constant dense<0.000000e+00> : vector<64x128xf32>
    %16 = tpu.matmul %14, %15, %cst_10 {dimension_numbers = #tpu.dot_dimension_numbers<[1], [0], [0], [1], [0, 0, 1, 1], [], []>} : vector<64x4xf32>, vector<4x128xf32>, vector<64x128xf32> -> vector<64x128xf32>
    %c0_11 = arith.constant 0 : index
    %c0_12 = arith.constant 0 : index
    %17 = vector.load %arg2[%c0_11, %c0_12] : memref<1x128xf32, #tpu.memory_space<vmem>>, vector<1x128xf32>
    %18 = vector.broadcast %17 : vector<1x128xf32> to vector<64x128xf32>
    %19 = arith.addf %16, %18 : vector<64x128xf32>
    %c0_13 = arith.constant 0 : index
    %c0_14 = arith.constant 0 : index
    %20 = vector.load %arg5[%c0_13, %c0_14] : memref<1x128xf32, #tpu.memory_space<vmem>>, vector<1x128xf32>
    %21 = vector.shape_cast %20 : vector<1x128xf32> to vector<1x128xf32>
    %22 = vector.broadcast %21 : vector<1x128xf32> to vector<8x128xf32>
    %cst_15 = arith.constant 0.000000e+00 : f32
    %23 = vector.broadcast %cst_15 : f32 to vector<8x64xf32>
    %cst_16 = arith.constant 0.000000e+00 : f32
    %24 = vector.broadcast %cst_16 : f32 to vector<8x32xf32>
    %cst_17 = arith.constant 0.000000e+00 : f32
    %25 = vector.broadcast %cst_17 : f32 to vector<8x32xf32>
    %cst_18 = arith.constant dense<0.000000e+00> : vector<8x256xf32>
    %26 = tpu.matmul %23, %0, %cst_18 {dimension_numbers = #tpu.dot_dimension_numbers<[1], [0], [0], [1], [0, 0, 1, 1], [], []>} : vector<8x64xf32>, vector<64x256xf32>, vector<8x256xf32> -> vector<8x256xf32>
    %27 = vector.extract_strided_slice %19 {offsets = [0, 0], sizes = [8, 128], strides = [1, 1]} : vector<64x128xf32> to vector<8x128xf32>
    %28 = vector.extract_strided_slice %26 {offsets = [0, 0], sizes = [8, 128], strides = [1, 1]} : vector<8x256xf32> to vector<8x128xf32>
    %29 = arith.addf %27, %28 : vector<8x128xf32>
    %30 = arith.mulf %29, %10 : vector<8x128xf32>
    %31 = math.tanh %30 : vector<8x128xf32>
    %32 = arith.mulf %31, %10 : vector<8x128xf32>
    %33 = arith.addf %32, %13 : vector<8x128xf32>
    %34 = vector.extract_strided_slice %33 {offsets = [0, 0], sizes = [8, 32], strides = [1, 1]} : vector<8x128xf32> to vector<8x32xf32>
    %35 = vector.extract_strided_slice %33 {offsets = [0, 32], sizes = [8, 32], strides = [1, 1]} : vector<8x128xf32> to vector<8x32xf32>
    %36 = vector.extract_strided_slice %33 {offsets = [0, 64], sizes = [8, 32], strides = [1, 1]} : vector<8x128xf32> to vector<8x32xf32>
    %37 = vector.extract_strided_slice %33 {offsets = [0, 96], sizes = [8, 32], strides = [1, 1]} : vector<8x128xf32> to vector<8x32xf32>
    %38 = arith.mulf %35, %24 : vector<8x32xf32>
    %39 = arith.mulf %34, %36 : vector<8x32xf32>
    %40 = arith.addf %38, %39 : vector<8x32xf32>
    %41 = math.tanh %40 : vector<8x32xf32>
    %42 = arith.mulf %37, %41 : vector<8x32xf32>
    %cst_19 = arith.constant dense<0.000000e+00> : vector<8x128xf32>
    %43 = tpu.matmul %42, %1, %cst_19 {dimension_numbers = #tpu.dot_dimension_numbers<[1], [0], [0], [1], [0, 0, 1, 1], [], []>} : vector<8x32xf32>, vector<32x128xf32>, vector<8x128xf32> -> vector<8x128xf32>
    %44 = arith.addf %43, %22 : vector<8x128xf32>
    %45 = vector.extract_strided_slice %26 {offsets = [0, 128], sizes = [8, 128], strides = [1, 1]} : vector<8x256xf32> to vector<8x128xf32>
    %46 = arith.addf %44, %45 : vector<8x128xf32>
    %47 = arith.mulf %46, %10 : vector<8x128xf32>
    %48 = math.tanh %47 : vector<8x128xf32>
    %49 = arith.mulf %48, %10 : vector<8x128xf32>
    %50 = arith.addf %49, %13 : vector<8x128xf32>
    %51 = vector.extract_strided_slice %50 {offsets = [0, 0], sizes = [8, 32], strides = [1, 1]} : vector<8x128xf32> to vector<8x32xf32>
    %52 = vector.extract_strided_slice %50 {offsets = [0, 32], sizes = [8, 32], strides = [1, 1]} : vector<8x128xf32> to vector<8x32xf32>
    %53 = vector.extract_strided_slice %50 {offsets = [0, 64], sizes = [8, 32], strides = [1, 1]} : vector<8x128xf32> to vector<8x32xf32>
    %54 = vector.extract_strided_slice %50 {offsets = [0, 96], sizes = [8, 32], strides = [1, 1]} : vector<8x128xf32> to vector<8x32xf32>
    %55 = arith.mulf %52, %25 : vector<8x32xf32>
    %56 = arith.mulf %51, %53 : vector<8x32xf32>
    %57 = arith.addf %55, %56 : vector<8x32xf32>
    %58 = math.tanh %57 : vector<8x32xf32>
    %59 = arith.mulf %54, %58 : vector<8x32xf32>
    %60 = tpu.concatenate %42, %59 in 1 : vector<8x32xf32>, vector<8x32xf32> -> vector<8x64xf32>
    %cst_20 = arith.constant dense<0.000000e+00> : vector<8x256xf32>
    %61 = tpu.matmul %60, %0, %cst_20 {dimension_numbers = #tpu.dot_dimension_numbers<[1], [0], [0], [1], [0, 0, 1, 1], [], []>} : vector<8x64xf32>, vector<64x256xf32>, vector<8x256xf32> -> vector<8x256xf32>
    %62 = vector.extract_strided_slice %19 {offsets = [8, 0], sizes = [8, 128], strides = [1, 1]} : vector<64x128xf32> to vector<8x128xf32>
    %63 = vector.extract_strided_slice %61 {offsets = [0, 0], sizes = [8, 128], strides = [1, 1]} : vector<8x256xf32> to vector<8x128xf32>
    %64 = arith.addf %62, %63 : vector<8x128xf32>
    %65 = arith.mulf %64, %10 : vector<8x128xf32>
    %66 = math.tanh %65 : vector<8x128xf32>
    %67 = arith.mulf %66, %10 : vector<8x128xf32>
    %68 = arith.addf %67, %13 : vector<8x128xf32>
    %69 = vector.extract_strided_slice %68 {offsets = [0, 0], sizes = [8, 32], strides = [1, 1]} : vector<8x128xf32> to vector<8x32xf32>
    %70 = vector.extract_strided_slice %68 {offsets = [0, 32], sizes = [8, 32], strides = [1, 1]} : vector<8x128xf32> to vector<8x32xf32>
    %71 = vector.extract_strided_slice %68 {offsets = [0, 64], sizes = [8, 32], strides = [1, 1]} : vector<8x128xf32> to vector<8x32xf32>
    %72 = vector.extract_strided_slice %68 {offsets = [0, 96], sizes = [8, 32], strides = [1, 1]} : vector<8x128xf32> to vector<8x32xf32>
    %73 = arith.mulf %70, %40 : vector<8x32xf32>
    %74 = arith.mulf %69, %71 : vector<8x32xf32>
    %75 = arith.addf %73, %74 : vector<8x32xf32>
    %76 = math.tanh %75 : vector<8x32xf32>
    %77 = arith.mulf %72, %76 : vector<8x32xf32>
    %cst_21 = arith.constant dense<0.000000e+00> : vector<8x128xf32>
    %78 = tpu.matmul %77, %1, %cst_21 {dimension_numbers = #tpu.dot_dimension_numbers<[1], [0], [0], [1], [0, 0, 1, 1], [], []>} : vector<8x32xf32>, vector<32x128xf32>, vector<8x128xf32> -> vector<8x128xf32>
    %79 = arith.addf %78, %22 : vector<8x128xf32>
    %80 = vector.extract_strided_slice %61 {offsets = [0, 128], sizes = [8, 128], strides = [1, 1]} : vector<8x256xf32> to vector<8x128xf32>
    %81 = arith.addf %79, %80 : vector<8x128xf32>
    %82 = arith.mulf %81, %10 : vector<8x128xf32>
    %83 = math.tanh %82 : vector<8x128xf32>
    %84 = arith.mulf %83, %10 : vector<8x128xf32>
    %85 = arith.addf %84, %13 : vector<8x128xf32>
    %86 = vector.extract_strided_slice %85 {offsets = [0, 0], sizes = [8, 32], strides = [1, 1]} : vector<8x128xf32> to vector<8x32xf32>
    %87 = vector.extract_strided_slice %85 {offsets = [0, 32], sizes = [8, 32], strides = [1, 1]} : vector<8x128xf32> to vector<8x32xf32>
    %88 = vector.extract_strided_slice %85 {offsets = [0, 64], sizes = [8, 32], strides = [1, 1]} : vector<8x128xf32> to vector<8x32xf32>
    %89 = vector.extract_strided_slice %85 {offsets = [0, 96], sizes = [8, 32], strides = [1, 1]} : vector<8x128xf32> to vector<8x32xf32>
    %90 = arith.mulf %87, %57 : vector<8x32xf32>
    %91 = arith.mulf %86, %88 : vector<8x32xf32>
    %92 = arith.addf %90, %91 : vector<8x32xf32>
    %93 = math.tanh %92 : vector<8x32xf32>
    %94 = arith.mulf %89, %93 : vector<8x32xf32>
    %95 = tpu.concatenate %77, %94 in 1 : vector<8x32xf32>, vector<8x32xf32> -> vector<8x64xf32>
    %cst_22 = arith.constant dense<0.000000e+00> : vector<8x256xf32>
    %96 = tpu.matmul %95, %0, %cst_22 {dimension_numbers = #tpu.dot_dimension_numbers<[1], [0], [0], [1], [0, 0, 1, 1], [], []>} : vector<8x64xf32>, vector<64x256xf32>, vector<8x256xf32> -> vector<8x256xf32>
    %97 = vector.extract_strided_slice %19 {offsets = [16, 0], sizes = [8, 128], strides = [1, 1]} : vector<64x128xf32> to vector<8x128xf32>
    %98 = vector.extract_strided_slice %96 {offsets = [0, 0], sizes = [8, 128], strides = [1, 1]} : vector<8x256xf32> to vector<8x128xf32>
    %99 = arith.addf %97, %98 : vector<8x128xf32>
    %100 = arith.mulf %99, %10 : vector<8x128xf32>
    %101 = math.tanh %100 : vector<8x128xf32>
    %102 = arith.mulf %101, %10 : vector<8x128xf32>
    %103 = arith.addf %102, %13 : vector<8x128xf32>
    %104 = vector.extract_strided_slice %103 {offsets = [0, 0], sizes = [8, 32], strides = [1, 1]} : vector<8x128xf32> to vector<8x32xf32>
    %105 = vector.extract_strided_slice %103 {offsets = [0, 32], sizes = [8, 32], strides = [1, 1]} : vector<8x128xf32> to vector<8x32xf32>
    %106 = vector.extract_strided_slice %103 {offsets = [0, 64], sizes = [8, 32], strides = [1, 1]} : vector<8x128xf32> to vector<8x32xf32>
    %107 = vector.extract_strided_slice %103 {offsets = [0, 96], sizes = [8, 32], strides = [1, 1]} : vector<8x128xf32> to vector<8x32xf32>
    %108 = arith.mulf %105, %75 : vector<8x32xf32>
    %109 = arith.mulf %104, %106 : vector<8x32xf32>
    %110 = arith.addf %108, %109 : vector<8x32xf32>
    %111 = math.tanh %110 : vector<8x32xf32>
    %112 = arith.mulf %107, %111 : vector<8x32xf32>
    %cst_23 = arith.constant dense<0.000000e+00> : vector<8x128xf32>
    %113 = tpu.matmul %112, %1, %cst_23 {dimension_numbers = #tpu.dot_dimension_numbers<[1], [0], [0], [1], [0, 0, 1, 1], [], []>} : vector<8x32xf32>, vector<32x128xf32>, vector<8x128xf32> -> vector<8x128xf32>
    %114 = arith.addf %113, %22 : vector<8x128xf32>
    %115 = vector.extract_strided_slice %96 {offsets = [0, 128], sizes = [8, 128], strides = [1, 1]} : vector<8x256xf32> to vector<8x128xf32>
    %116 = arith.addf %114, %115 : vector<8x128xf32>
    %117 = arith.mulf %116, %10 : vector<8x128xf32>
    %118 = math.tanh %117 : vector<8x128xf32>
    %119 = arith.mulf %118, %10 : vector<8x128xf32>
    %120 = arith.addf %119, %13 : vector<8x128xf32>
    %121 = vector.extract_strided_slice %120 {offsets = [0, 0], sizes = [8, 32], strides = [1, 1]} : vector<8x128xf32> to vector<8x32xf32>
    %122 = vector.extract_strided_slice %120 {offsets = [0, 32], sizes = [8, 32], strides = [1, 1]} : vector<8x128xf32> to vector<8x32xf32>
    %123 = vector.extract_strided_slice %120 {offsets = [0, 64], sizes = [8, 32], strides = [1, 1]} : vector<8x128xf32> to vector<8x32xf32>
    %124 = vector.extract_strided_slice %120 {offsets = [0, 96], sizes = [8, 32], strides = [1, 1]} : vector<8x128xf32> to vector<8x32xf32>
    %125 = arith.mulf %122, %92 : vector<8x32xf32>
    %126 = arith.mulf %121, %123 : vector<8x32xf32>
    %127 = arith.addf %125, %126 : vector<8x32xf32>
    %128 = math.tanh %127 : vector<8x32xf32>
    %129 = arith.mulf %124, %128 : vector<8x32xf32>
    %130 = tpu.concatenate %112, %129 in 1 : vector<8x32xf32>, vector<8x32xf32> -> vector<8x64xf32>
    %cst_24 = arith.constant dense<0.000000e+00> : vector<8x256xf32>
    %131 = tpu.matmul %130, %0, %cst_24 {dimension_numbers = #tpu.dot_dimension_numbers<[1], [0], [0], [1], [0, 0, 1, 1], [], []>} : vector<8x64xf32>, vector<64x256xf32>, vector<8x256xf32> -> vector<8x256xf32>
    %132 = vector.extract_strided_slice %19 {offsets = [24, 0], sizes = [8, 128], strides = [1, 1]} : vector<64x128xf32> to vector<8x128xf32>
    %133 = vector.extract_strided_slice %131 {offsets = [0, 0], sizes = [8, 128], strides = [1, 1]} : vector<8x256xf32> to vector<8x128xf32>
    %134 = arith.addf %132, %133 : vector<8x128xf32>
    %135 = arith.mulf %134, %10 : vector<8x128xf32>
    %136 = math.tanh %135 : vector<8x128xf32>
    %137 = arith.mulf %136, %10 : vector<8x128xf32>
    %138 = arith.addf %137, %13 : vector<8x128xf32>
    %139 = vector.extract_strided_slice %138 {offsets = [0, 0], sizes = [8, 32], strides = [1, 1]} : vector<8x128xf32> to vector<8x32xf32>
    %140 = vector.extract_strided_slice %138 {offsets = [0, 32], sizes = [8, 32], strides = [1, 1]} : vector<8x128xf32> to vector<8x32xf32>
    %141 = vector.extract_strided_slice %138 {offsets = [0, 64], sizes = [8, 32], strides = [1, 1]} : vector<8x128xf32> to vector<8x32xf32>
    %142 = vector.extract_strided_slice %138 {offsets = [0, 96], sizes = [8, 32], strides = [1, 1]} : vector<8x128xf32> to vector<8x32xf32>
    %143 = arith.mulf %140, %110 : vector<8x32xf32>
    %144 = arith.mulf %139, %141 : vector<8x32xf32>
    %145 = arith.addf %143, %144 : vector<8x32xf32>
    %146 = math.tanh %145 : vector<8x32xf32>
    %147 = arith.mulf %142, %146 : vector<8x32xf32>
    %cst_25 = arith.constant dense<0.000000e+00> : vector<8x128xf32>
    %148 = tpu.matmul %147, %1, %cst_25 {dimension_numbers = #tpu.dot_dimension_numbers<[1], [0], [0], [1], [0, 0, 1, 1], [], []>} : vector<8x32xf32>, vector<32x128xf32>, vector<8x128xf32> -> vector<8x128xf32>
    %149 = arith.addf %148, %22 : vector<8x128xf32>
    %150 = vector.extract_strided_slice %131 {offsets = [0, 128], sizes = [8, 128], strides = [1, 1]} : vector<8x256xf32> to vector<8x128xf32>
    %151 = arith.addf %149, %150 : vector<8x128xf32>
    %152 = arith.mulf %151, %10 : vector<8x128xf32>
    %153 = math.tanh %152 : vector<8x128xf32>
    %154 = arith.mulf %153, %10 : vector<8x128xf32>
    %155 = arith.addf %154, %13 : vector<8x128xf32>
    %156 = vector.extract_strided_slice %155 {offsets = [0, 0], sizes = [8, 32], strides = [1, 1]} : vector<8x128xf32> to vector<8x32xf32>
    %157 = vector.extract_strided_slice %155 {offsets = [0, 32], sizes = [8, 32], strides = [1, 1]} : vector<8x128xf32> to vector<8x32xf32>
    %158 = vector.extract_strided_slice %155 {offsets = [0, 64], sizes = [8, 32], strides = [1, 1]} : vector<8x128xf32> to vector<8x32xf32>
    %159 = vector.extract_strided_slice %155 {offsets = [0, 96], sizes = [8, 32], strides = [1, 1]} : vector<8x128xf32> to vector<8x32xf32>
    %160 = arith.mulf %157, %127 : vector<8x32xf32>
    %161 = arith.mulf %156, %158 : vector<8x32xf32>
    %162 = arith.addf %160, %161 : vector<8x32xf32>
    %163 = math.tanh %162 : vector<8x32xf32>
    %164 = arith.mulf %159, %163 : vector<8x32xf32>
    %165 = tpu.concatenate %147, %164 in 1 : vector<8x32xf32>, vector<8x32xf32> -> vector<8x64xf32>
    %cst_26 = arith.constant dense<0.000000e+00> : vector<8x256xf32>
    %166 = tpu.matmul %165, %0, %cst_26 {dimension_numbers = #tpu.dot_dimension_numbers<[1], [0], [0], [1], [0, 0, 1, 1], [], []>} : vector<8x64xf32>, vector<64x256xf32>, vector<8x256xf32> -> vector<8x256xf32>
    %167 = vector.extract_strided_slice %19 {offsets = [32, 0], sizes = [8, 128], strides = [1, 1]} : vector<64x128xf32> to vector<8x128xf32>
    %168 = vector.extract_strided_slice %166 {offsets = [0, 0], sizes = [8, 128], strides = [1, 1]} : vector<8x256xf32> to vector<8x128xf32>
    %169 = arith.addf %167, %168 : vector<8x128xf32>
    %170 = arith.mulf %169, %10 : vector<8x128xf32>
    %171 = math.tanh %170 : vector<8x128xf32>
    %172 = arith.mulf %171, %10 : vector<8x128xf32>
    %173 = arith.addf %172, %13 : vector<8x128xf32>
    %174 = vector.extract_strided_slice %173 {offsets = [0, 0], sizes = [8, 32], strides = [1, 1]} : vector<8x128xf32> to vector<8x32xf32>
    %175 = vector.extract_strided_slice %173 {offsets = [0, 32], sizes = [8, 32], strides = [1, 1]} : vector<8x128xf32> to vector<8x32xf32>
    %176 = vector.extract_strided_slice %173 {offsets = [0, 64], sizes = [8, 32], strides = [1, 1]} : vector<8x128xf32> to vector<8x32xf32>
    %177 = vector.extract_strided_slice %173 {offsets = [0, 96], sizes = [8, 32], strides = [1, 1]} : vector<8x128xf32> to vector<8x32xf32>
    %178 = arith.mulf %175, %145 : vector<8x32xf32>
    %179 = arith.mulf %174, %176 : vector<8x32xf32>
    %180 = arith.addf %178, %179 : vector<8x32xf32>
    %181 = math.tanh %180 : vector<8x32xf32>
    %182 = arith.mulf %177, %181 : vector<8x32xf32>
    %cst_27 = arith.constant dense<0.000000e+00> : vector<8x128xf32>
    %183 = tpu.matmul %182, %1, %cst_27 {dimension_numbers = #tpu.dot_dimension_numbers<[1], [0], [0], [1], [0, 0, 1, 1], [], []>} : vector<8x32xf32>, vector<32x128xf32>, vector<8x128xf32> -> vector<8x128xf32>
    %184 = arith.addf %183, %22 : vector<8x128xf32>
    %185 = vector.extract_strided_slice %166 {offsets = [0, 128], sizes = [8, 128], strides = [1, 1]} : vector<8x256xf32> to vector<8x128xf32>
    %186 = arith.addf %184, %185 : vector<8x128xf32>
    %187 = arith.mulf %186, %10 : vector<8x128xf32>
    %188 = math.tanh %187 : vector<8x128xf32>
    %189 = arith.mulf %188, %10 : vector<8x128xf32>
    %190 = arith.addf %189, %13 : vector<8x128xf32>
    %191 = vector.extract_strided_slice %190 {offsets = [0, 0], sizes = [8, 32], strides = [1, 1]} : vector<8x128xf32> to vector<8x32xf32>
    %192 = vector.extract_strided_slice %190 {offsets = [0, 32], sizes = [8, 32], strides = [1, 1]} : vector<8x128xf32> to vector<8x32xf32>
    %193 = vector.extract_strided_slice %190 {offsets = [0, 64], sizes = [8, 32], strides = [1, 1]} : vector<8x128xf32> to vector<8x32xf32>
    %194 = vector.extract_strided_slice %190 {offsets = [0, 96], sizes = [8, 32], strides = [1, 1]} : vector<8x128xf32> to vector<8x32xf32>
    %195 = arith.mulf %192, %162 : vector<8x32xf32>
    %196 = arith.mulf %191, %193 : vector<8x32xf32>
    %197 = arith.addf %195, %196 : vector<8x32xf32>
    %198 = math.tanh %197 : vector<8x32xf32>
    %199 = arith.mulf %194, %198 : vector<8x32xf32>
    %200 = tpu.concatenate %182, %199 in 1 : vector<8x32xf32>, vector<8x32xf32> -> vector<8x64xf32>
    %cst_28 = arith.constant dense<0.000000e+00> : vector<8x256xf32>
    %201 = tpu.matmul %200, %0, %cst_28 {dimension_numbers = #tpu.dot_dimension_numbers<[1], [0], [0], [1], [0, 0, 1, 1], [], []>} : vector<8x64xf32>, vector<64x256xf32>, vector<8x256xf32> -> vector<8x256xf32>
    %202 = vector.extract_strided_slice %19 {offsets = [40, 0], sizes = [8, 128], strides = [1, 1]} : vector<64x128xf32> to vector<8x128xf32>
    %203 = vector.extract_strided_slice %201 {offsets = [0, 0], sizes = [8, 128], strides = [1, 1]} : vector<8x256xf32> to vector<8x128xf32>
    %204 = arith.addf %202, %203 : vector<8x128xf32>
    %205 = arith.mulf %204, %10 : vector<8x128xf32>
    %206 = math.tanh %205 : vector<8x128xf32>
    %207 = arith.mulf %206, %10 : vector<8x128xf32>
    %208 = arith.addf %207, %13 : vector<8x128xf32>
    %209 = vector.extract_strided_slice %208 {offsets = [0, 0], sizes = [8, 32], strides = [1, 1]} : vector<8x128xf32> to vector<8x32xf32>
    %210 = vector.extract_strided_slice %208 {offsets = [0, 32], sizes = [8, 32], strides = [1, 1]} : vector<8x128xf32> to vector<8x32xf32>
    %211 = vector.extract_strided_slice %208 {offsets = [0, 64], sizes = [8, 32], strides = [1, 1]} : vector<8x128xf32> to vector<8x32xf32>
    %212 = vector.extract_strided_slice %208 {offsets = [0, 96], sizes = [8, 32], strides = [1, 1]} : vector<8x128xf32> to vector<8x32xf32>
    %213 = arith.mulf %210, %180 : vector<8x32xf32>
    %214 = arith.mulf %209, %211 : vector<8x32xf32>
    %215 = arith.addf %213, %214 : vector<8x32xf32>
    %216 = math.tanh %215 : vector<8x32xf32>
    %217 = arith.mulf %212, %216 : vector<8x32xf32>
    %cst_29 = arith.constant dense<0.000000e+00> : vector<8x128xf32>
    %218 = tpu.matmul %217, %1, %cst_29 {dimension_numbers = #tpu.dot_dimension_numbers<[1], [0], [0], [1], [0, 0, 1, 1], [], []>} : vector<8x32xf32>, vector<32x128xf32>, vector<8x128xf32> -> vector<8x128xf32>
    %219 = arith.addf %218, %22 : vector<8x128xf32>
    %220 = vector.extract_strided_slice %201 {offsets = [0, 128], sizes = [8, 128], strides = [1, 1]} : vector<8x256xf32> to vector<8x128xf32>
    %221 = arith.addf %219, %220 : vector<8x128xf32>
    %222 = arith.mulf %221, %10 : vector<8x128xf32>
    %223 = math.tanh %222 : vector<8x128xf32>
    %224 = arith.mulf %223, %10 : vector<8x128xf32>
    %225 = arith.addf %224, %13 : vector<8x128xf32>
    %226 = vector.extract_strided_slice %225 {offsets = [0, 0], sizes = [8, 32], strides = [1, 1]} : vector<8x128xf32> to vector<8x32xf32>
    %227 = vector.extract_strided_slice %225 {offsets = [0, 32], sizes = [8, 32], strides = [1, 1]} : vector<8x128xf32> to vector<8x32xf32>
    %228 = vector.extract_strided_slice %225 {offsets = [0, 64], sizes = [8, 32], strides = [1, 1]} : vector<8x128xf32> to vector<8x32xf32>
    %229 = vector.extract_strided_slice %225 {offsets = [0, 96], sizes = [8, 32], strides = [1, 1]} : vector<8x128xf32> to vector<8x32xf32>
    %230 = arith.mulf %227, %197 : vector<8x32xf32>
    %231 = arith.mulf %226, %228 : vector<8x32xf32>
    %232 = arith.addf %230, %231 : vector<8x32xf32>
    %233 = math.tanh %232 : vector<8x32xf32>
    %234 = arith.mulf %229, %233 : vector<8x32xf32>
    %235 = tpu.concatenate %217, %234 in 1 : vector<8x32xf32>, vector<8x32xf32> -> vector<8x64xf32>
    %cst_30 = arith.constant dense<0.000000e+00> : vector<8x256xf32>
    %236 = tpu.matmul %235, %0, %cst_30 {dimension_numbers = #tpu.dot_dimension_numbers<[1], [0], [0], [1], [0, 0, 1, 1], [], []>} : vector<8x64xf32>, vector<64x256xf32>, vector<8x256xf32> -> vector<8x256xf32>
    %237 = vector.extract_strided_slice %19 {offsets = [48, 0], sizes = [8, 128], strides = [1, 1]} : vector<64x128xf32> to vector<8x128xf32>
    %238 = vector.extract_strided_slice %236 {offsets = [0, 0], sizes = [8, 128], strides = [1, 1]} : vector<8x256xf32> to vector<8x128xf32>
    %239 = arith.addf %237, %238 : vector<8x128xf32>
    %240 = arith.mulf %239, %10 : vector<8x128xf32>
    %241 = math.tanh %240 : vector<8x128xf32>
    %242 = arith.mulf %241, %10 : vector<8x128xf32>
    %243 = arith.addf %242, %13 : vector<8x128xf32>
    %244 = vector.extract_strided_slice %243 {offsets = [0, 0], sizes = [8, 32], strides = [1, 1]} : vector<8x128xf32> to vector<8x32xf32>
    %245 = vector.extract_strided_slice %243 {offsets = [0, 32], sizes = [8, 32], strides = [1, 1]} : vector<8x128xf32> to vector<8x32xf32>
    %246 = vector.extract_strided_slice %243 {offsets = [0, 64], sizes = [8, 32], strides = [1, 1]} : vector<8x128xf32> to vector<8x32xf32>
    %247 = vector.extract_strided_slice %243 {offsets = [0, 96], sizes = [8, 32], strides = [1, 1]} : vector<8x128xf32> to vector<8x32xf32>
    %248 = arith.mulf %245, %215 : vector<8x32xf32>
    %249 = arith.mulf %244, %246 : vector<8x32xf32>
    %250 = arith.addf %248, %249 : vector<8x32xf32>
    %251 = math.tanh %250 : vector<8x32xf32>
    %252 = arith.mulf %247, %251 : vector<8x32xf32>
    %cst_31 = arith.constant dense<0.000000e+00> : vector<8x128xf32>
    %253 = tpu.matmul %252, %1, %cst_31 {dimension_numbers = #tpu.dot_dimension_numbers<[1], [0], [0], [1], [0, 0, 1, 1], [], []>} : vector<8x32xf32>, vector<32x128xf32>, vector<8x128xf32> -> vector<8x128xf32>
    %254 = arith.addf %253, %22 : vector<8x128xf32>
    %255 = vector.extract_strided_slice %236 {offsets = [0, 128], sizes = [8, 128], strides = [1, 1]} : vector<8x256xf32> to vector<8x128xf32>
    %256 = arith.addf %254, %255 : vector<8x128xf32>
    %257 = arith.mulf %256, %10 : vector<8x128xf32>
    %258 = math.tanh %257 : vector<8x128xf32>
    %259 = arith.mulf %258, %10 : vector<8x128xf32>
    %260 = arith.addf %259, %13 : vector<8x128xf32>
    %261 = vector.extract_strided_slice %260 {offsets = [0, 0], sizes = [8, 32], strides = [1, 1]} : vector<8x128xf32> to vector<8x32xf32>
    %262 = vector.extract_strided_slice %260 {offsets = [0, 32], sizes = [8, 32], strides = [1, 1]} : vector<8x128xf32> to vector<8x32xf32>
    %263 = vector.extract_strided_slice %260 {offsets = [0, 64], sizes = [8, 32], strides = [1, 1]} : vector<8x128xf32> to vector<8x32xf32>
    %264 = vector.extract_strided_slice %260 {offsets = [0, 96], sizes = [8, 32], strides = [1, 1]} : vector<8x128xf32> to vector<8x32xf32>
    %265 = arith.mulf %262, %232 : vector<8x32xf32>
    %266 = arith.mulf %261, %263 : vector<8x32xf32>
    %267 = arith.addf %265, %266 : vector<8x32xf32>
    %268 = math.tanh %267 : vector<8x32xf32>
    %269 = arith.mulf %264, %268 : vector<8x32xf32>
    %270 = tpu.concatenate %252, %269 in 1 : vector<8x32xf32>, vector<8x32xf32> -> vector<8x64xf32>
    %cst_32 = arith.constant dense<0.000000e+00> : vector<8x256xf32>
    %271 = tpu.matmul %270, %0, %cst_32 {dimension_numbers = #tpu.dot_dimension_numbers<[1], [0], [0], [1], [0, 0, 1, 1], [], []>} : vector<8x64xf32>, vector<64x256xf32>, vector<8x256xf32> -> vector<8x256xf32>
    %272 = vector.extract_strided_slice %19 {offsets = [56, 0], sizes = [8, 128], strides = [1, 1]} : vector<64x128xf32> to vector<8x128xf32>
    %273 = vector.extract_strided_slice %271 {offsets = [0, 0], sizes = [8, 128], strides = [1, 1]} : vector<8x256xf32> to vector<8x128xf32>
    %274 = arith.addf %272, %273 : vector<8x128xf32>
    %275 = arith.mulf %274, %10 : vector<8x128xf32>
    %276 = math.tanh %275 : vector<8x128xf32>
    %277 = arith.mulf %276, %10 : vector<8x128xf32>
    %278 = arith.addf %277, %13 : vector<8x128xf32>
    %279 = vector.extract_strided_slice %278 {offsets = [0, 0], sizes = [8, 32], strides = [1, 1]} : vector<8x128xf32> to vector<8x32xf32>
    %280 = vector.extract_strided_slice %278 {offsets = [0, 32], sizes = [8, 32], strides = [1, 1]} : vector<8x128xf32> to vector<8x32xf32>
    %281 = vector.extract_strided_slice %278 {offsets = [0, 64], sizes = [8, 32], strides = [1, 1]} : vector<8x128xf32> to vector<8x32xf32>
    %282 = vector.extract_strided_slice %278 {offsets = [0, 96], sizes = [8, 32], strides = [1, 1]} : vector<8x128xf32> to vector<8x32xf32>
    %283 = arith.mulf %280, %250 : vector<8x32xf32>
    %284 = arith.mulf %279, %281 : vector<8x32xf32>
    %285 = arith.addf %283, %284 : vector<8x32xf32>
    %286 = math.tanh %285 : vector<8x32xf32>
    %287 = arith.mulf %282, %286 : vector<8x32xf32>
    %cst_33 = arith.constant dense<0.000000e+00> : vector<8x128xf32>
    %288 = tpu.matmul %287, %1, %cst_33 {dimension_numbers = #tpu.dot_dimension_numbers<[1], [0], [0], [1], [0, 0, 1, 1], [], []>} : vector<8x32xf32>, vector<32x128xf32>, vector<8x128xf32> -> vector<8x128xf32>
    %289 = arith.addf %288, %22 : vector<8x128xf32>
    %290 = vector.extract_strided_slice %271 {offsets = [0, 128], sizes = [8, 128], strides = [1, 1]} : vector<8x256xf32> to vector<8x128xf32>
    %291 = arith.addf %289, %290 : vector<8x128xf32>
    %292 = arith.mulf %291, %10 : vector<8x128xf32>
    %293 = math.tanh %292 : vector<8x128xf32>
    %294 = arith.mulf %293, %10 : vector<8x128xf32>
    %295 = arith.addf %294, %13 : vector<8x128xf32>
    %296 = vector.extract_strided_slice %295 {offsets = [0, 0], sizes = [8, 32], strides = [1, 1]} : vector<8x128xf32> to vector<8x32xf32>
    %297 = vector.extract_strided_slice %295 {offsets = [0, 32], sizes = [8, 32], strides = [1, 1]} : vector<8x128xf32> to vector<8x32xf32>
    %298 = vector.extract_strided_slice %295 {offsets = [0, 64], sizes = [8, 32], strides = [1, 1]} : vector<8x128xf32> to vector<8x32xf32>
    %299 = vector.extract_strided_slice %295 {offsets = [0, 96], sizes = [8, 32], strides = [1, 1]} : vector<8x128xf32> to vector<8x32xf32>
    %300 = arith.mulf %297, %267 : vector<8x32xf32>
    %301 = arith.mulf %296, %298 : vector<8x32xf32>
    %302 = arith.addf %300, %301 : vector<8x32xf32>
    %303 = math.tanh %302 : vector<8x32xf32>
    %304 = arith.mulf %299, %303 : vector<8x32xf32>
    %c0_34 = arith.constant 0 : index
    %c0_35 = arith.constant 0 : index
    %305 = vector.load %arg6[%c0_34, %c0_35] : memref<32x128xf32, #tpu.memory_space<vmem>>, vector<32x128xf32>
    %cst_36 = arith.constant dense<0.000000e+00> : vector<8x128xf32>
    %306 = tpu.matmul %304, %305, %cst_36 {dimension_numbers = #tpu.dot_dimension_numbers<[1], [0], [0], [1], [0, 0, 1, 1], [], []>} : vector<8x32xf32>, vector<32x128xf32>, vector<8x128xf32> -> vector<8x128xf32>
    %c0_37 = arith.constant 0 : index
    %c0_38 = arith.constant 0 : index
    %307 = vector.load %arg7[%c0_37, %c0_38] : memref<1x128xf32, #tpu.memory_space<vmem>>, vector<1x128xf32>
    %308 = vector.broadcast %307 : vector<1x128xf32> to vector<8x128xf32>
    %309 = arith.addf %306, %308 : vector<8x128xf32>
    %cst_39 = arith.constant 0.000000e+00 : f32
    %310 = vector.broadcast %cst_39 : f32 to vector<8x128xf32>
    %311 = arith.cmpf oge, %309, %310 : vector<8x128xf32>
    %cst_40 = arith.constant 0.00999999977 : f32
    %312 = vector.broadcast %cst_40 : f32 to vector<8x128xf32>
    %313 = arith.mulf %312, %309 : vector<8x128xf32>
    %314 = arith.select %311, %309, %313 : vector<8x128xi1>, vector<8x128xf32>
    %c0_41 = arith.constant 0 : index
    %c0_42 = arith.constant 0 : index
    %315 = vector.load %arg8[%c0_41, %c0_42] : memref<8x128xf32, #tpu.memory_space<vmem>>, vector<8x128xf32>
    tpu.vector_store %arg8[%c0_41, %c0_42], %314 {strides = array<i32>} : memref<8x128xf32, #tpu.memory_space<vmem>>, vector<8x128xf32>,
    return
  }
}

</mosaic_0001>

<llo_original>
// kernel: tpu_custom_call.1
$region0: #{tpu_custom_call.1}
  #allocation0 [shape = 'u32[]', space=smem, size = 0x4, offset = 0x4, fixed_abs, tag = 'smem constant byte address 0x4 - core index']
  #allocation1 [shape = 'u32[144,128]{1,0:T(1,128)}', space=vmem, size = 0x12000, scoped, tag = 'internal scratch']
  %s0 = inlined_call_operand.vmem [shape: f32[64,4], index: 0, kind: input, shape index: {}]
  %s1 = inlined_call_operand.vmem [shape: f32[4,128], index: 1, kind: input, shape index: {}]
  %s2 = inlined_call_operand.vmem [shape: f32[1,128], index: 2, kind: input, shape index: {}]
  %s3 = inlined_call_operand.hbm [shape: f32[64,256], index: 3, kind: input, shape index: {}]
  %s4 = inlined_call_operand.vmem [shape: f32[32,128], index: 4, kind: input, shape index: {}]
  %s5 = inlined_call_operand.vmem [shape: f32[1,128], index: 5, kind: input, shape index: {}]
  %s6 = inlined_call_operand.vmem [shape: f32[32,128], index: 6, kind: input, shape index: {}]
  %s7 = inlined_call_operand.vmem [shape: f32[1,128], index: 7, kind: input, shape index: {}]
  %s8 = inlined_call_operand.hbm [shape: f32[8,128], index: 8, kind: output, shape index: {}]
  %s9 = sld [smem:[#allocation0]]
  $region46: #{tpu_custom_call.1} parent=0
    _
  %s11 = ssub.s32 1, %s9
  %s12 = scalar_select 0, %s11, %s9
  $region1: #{tpu_custom_call.1} parent=0
    #allocation2 [shape = 'u8[65536]{0}', space=vmem, size = 0x10000, scoped, tag = 'input window, operand 3, single buffered']
    #allocation3 [shape = 's32[1]{0}', space=sflag, size = 0x4, scoped, tag = 'scoped memory for tpu_custom_call.1']
    #allocation4 [shape = 's32[1]{0}', space=sflag, size = 0x4, scoped, tag = 'scoped memory for tpu_custom_call.1']
    #allocation5 [shape = 'u8[4096]{0}', space=vmem, size = 0x1000, scoped, tag = 'output window, operand 0, single buffered']
    %13 = vsyncpa [#allocation3], 0
    %14 = vsyncpa [#allocation4], 0
    // Predicated region
    $region2: #{tpu_custom_call.1} parent=1 // pred_check
      _
    $region3: #{tpu_custom_call.1} parent=1 // pred_check_branch
      %16 = sbr.rel (0) target = $region5
    $region4: #{tpu_custom_call.1} parent=1 // pred_region
      _
    $region5: #{tpu_custom_call.1} parent=1 // pred_fallthru
      _
    // Predicated region
    $region6: #{tpu_custom_call.1} parent=1 // pred_check
      _
    $region7: #{tpu_custom_call.1} parent=1 // pred_check_branch
      %18 = sbr.rel (0) target = $region9
    $region8: #{tpu_custom_call.1} parent=1 // pred_region
      _
    $region9: #{tpu_custom_call.1} parent=1 // pred_fallthru
      _
    // Predicated region
    $region10: #{tpu_custom_call.1} parent=1 // pred_check
      _
    $region11: #{tpu_custom_call.1} parent=1 // pred_check_branch
      %20 = sbr.rel (0) target = $region13
    $region12: #{tpu_custom_call.1} parent=1 // pred_region
      _
    $region13: #{tpu_custom_call.1} parent=1 // pred_fallthru
      _
    // Predicated region
    $region14: #{tpu_custom_call.1} parent=1 // pred_check
      _
    $region15: #{tpu_custom_call.1} parent=1 // pred_check_branch
      %22 = sbr.rel (0) target = $region17
    $region16: #{tpu_custom_call.1} parent=1 // pred_region
      %s24 = ssub.s32 2048, 2048
      %25 = vsyncadd [#allocation3], %s24
      %s26 = sshll.u32 [#allocation2], 4
      %s27 = int_to_ptr.vmem [resolvable:$true] %s26
      %32 = dma.hbm_to_vmem [thread:$0]  %s3, 2048, %s27, [#allocation3], 256, 256, 16
    $region17: #{tpu_custom_call.1} parent=1 // pred_fallthru
      _
    // Predicated region
    $region18: #{tpu_custom_call.1} parent=1 // pred_check
      _
    $region19: #{tpu_custom_call.1} parent=1 // pred_check_branch
      %34 = sbr.rel (0) target = $region21
    $region20: #{tpu_custom_call.1} parent=1 // pred_region
      _
    $region21: #{tpu_custom_call.1} parent=1 // pred_fallthru
      _
    // Predicated region
    $region22: #{tpu_custom_call.1} parent=1 // pred_check
      _
    $region23: #{tpu_custom_call.1} parent=1 // pred_check_branch
      %36 = sbr.rel (0) target = $region25
    $region24: #{tpu_custom_call.1} parent=1 // pred_region
      _
    $region25: #{tpu_custom_call.1} parent=1 // pred_fallthru
      _
    // Predicated region
    $region26: #{tpu_custom_call.1} parent=1 // pred_check
      _
    $region27: #{tpu_custom_call.1} parent=1 // pred_check_branch
      %38 = sbr.rel (0) target = $region29
    $region28: #{tpu_custom_call.1} parent=1 // pred_region
      _
    $region29: #{tpu_custom_call.1} parent=1 // pred_fallthru
      _
    // Predicated region
    $region30: #{tpu_custom_call.1} parent=1 // pred_check
      _
    $region31: #{tpu_custom_call.1} parent=1 // pred_check_branch
      %40 = sbr.rel (0) target = $region33
    $region32: #{tpu_custom_call.1} parent=1 // pred_region
      _
    $region33: #{tpu_custom_call.1} parent=1 // pred_fallthru
      _
    // Predicated region
    $region34: #{tpu_custom_call.1} parent=1 // pred_check
      _
    $region35: #{tpu_custom_call.1} parent=1 // pred_check_branch
      %42 = sbr.rel (0) target = $region37
    $region36: #{tpu_custom_call.1} parent=1 // pred_region
      %43 = dma.done [#allocation3], 2048
    $region37: #{tpu_custom_call.1} parent=1 // pred_fallthru
      _
    %v44 = vld [vmem:[#allocation2] sm:$0xff]
    %v45 = vld [vmem:[#allocation2 + $0x8] sm:$0xff]
    %v46 = vld [vmem:[#allocation2 + $0x10] sm:$0xff]
    %v47 = vld [vmem:[#allocation2 + $0x18] sm:$0xff]
    %v48 = vld [vmem:[#allocation2 + $0x20] sm:$0xff]
    %v49 = vld [vmem:[#allocation2 + $0x28] sm:$0xff]
    %v50 = vld [vmem:[#allocation2 + $0x30] sm:$0xff]
    %v51 = vld [vmem:[#allocation2 + $0x38] sm:$0xff]
    %v52 = vld [vmem:[#allocation2 + $0x40] sm:$0xff]
    %v53 = vld [vmem:[#allocation2 + $0x48] sm:$0xff]
    %v54 = vld [vmem:[#allocation2 + $0x50] sm:$0xff]
    %v55 = vld [vmem:[#allocation2 + $0x58] sm:$0xff]
    %v56 = vld [vmem:[#allocation2 + $0x60] sm:$0xff]
    %v57 = vld [vmem:[#allocation2 + $0x68] sm:$0xff]
    %v58 = vld [vmem:[#allocation2 + $0x70] sm:$0xff]
    %v59 = vld [vmem:[#allocation2 + $0x78] sm:$0xff]
    %v60 = vld [vmem:[%s4] sm:$0xff]
    %v61 = vld [vmem:[%s4 + $0x8] sm:$0xff]
    %v62 = vld [vmem:[%s4 + $0x10] sm:$0xff]
    %v63 = vld [vmem:[%s4 + $0x18] sm:$0xff]
    %v64 = vlaneseq
    %v65 = vand.u32 %v64, 127
    %vm66 = vcmp.ge.s32.totalorder %v65, 64
    %vm67 = vcmp.lt.s32.totalorder %v65, 96
    %vm68 = vmand %vm66, %vm67
    %v69 = vsel %vm68, 1.0, 0.5
    %v70 = vsel %vm68, 0.0, 0.5
    %v71 = vld [vmem:[%s0] sm:$0xff]
    %v72 = vld [vmem:[%s0 + $0x8] sm:$0xff]
    %v73 = vld [vmem:[%s0 + $0x10] sm:$0xff]
    %v74 = vld [vmem:[%s0 + $0x18] sm:$0xff]
    %v75 = vld [vmem:[%s0 + $0x20] sm:$0xff]
    %v76 = vld [vmem:[%s0 + $0x28] sm:$0xff]
    %v77 = vld [vmem:[%s0 + $0x30] sm:$0xff]
    %v78 = vld [vmem:[%s0 + $0x38] sm:$0xff]
    %v79 = vld [vmem:[%s1] sm:$0xf]
    %v80 = vld [vmem:[%s2] sm:$0x1]
    %v82 = vlaneseq
    %v83 = vshrl.u32 %v82, 7
    %v84 = vsub.s32 0, %v83
    %v85 = vrot.slane %v80, %v84
    %vm87 = vcmask 31744
    %v89 = vsel %vm87, %v71, 0
    %v92 = vsel %vm87, %v72, 0
    %v95 = vsel %vm87, %v73, 0
    %v98 = vsel %vm87, %v74, 0
    %v101 = vsel %vm87, %v75, 0
    %v104 = vsel %vm87, %v76, 0
    %v107 = vsel %vm87, %v77, 0
    %v110 = vsel %vm87, %v78, 0
    %vm112 = vcmask 1043456
    %v114 = vsel %vm112, %v79, 0
    %116 = vmatprep.subr.mxu0 0.0
    %117 = vmatpush1.msra.mxu0 0.0
    %118 = vmatprep.subr.mxu0 0.0
    %119 = vmatpush1.msra.mxu0 0.0
    %120 = vmatprep.subr.mxu0 0.0
    %121 = vmatpush1.msra.mxu0 0.0
    %122 = vmatprep.subr.mxu0 0.0
    %123 = vmatpush1.msra.mxu0 0.0
    %124 = vmatprep.subr.mxu0 0.0
    %125 = vmatpush1.msra.mxu0 0.0
    %126 = vmatprep.subr.mxu0 0.0
    %127 = vmatpush1.msra.mxu0 0.0
    %128 = vmatprep.subr.mxu0 0.0
    %129 = vmatpush1.msra.mxu0 0.0
    %130 = vmatprep.subr.mxu0 0.0
    %131 = vmatpush1.msra.mxu0 0.0
    %132 = vmatprep.subr.mxu0 0.0
    %133 = vmatpush1.msra.mxu0 0.0
    %134 = vmatprep.subr.mxu0 0.0
    %135 = vmatpush1.msra.mxu0 0.0
    %136 = vmatprep.subr.mxu0 0.0
    %137 = vmatpush1.msra.mxu0 0.0
    %138 = vmatprep.subr.mxu0 0.0
    %139 = vmatpush1.msra.mxu0 0.0
    %140 = vmatprep.subr.mxu0 0.0
    %141 = vmatpush1.msra.mxu0 0.0
    %142 = vmatprep.subr.mxu0 0.0
    %143 = vmatpush1.msra.mxu0 0.0
    %144 = vmatprep.subr.mxu0 0.0
    %145 = vmatpush1.msra.mxu0 0.0
    %146 = vmatprep.subr.mxu0 0.0
    %147 = vmatpush1.msra.mxu0 %v114
    %148 = vmatprep.subr.mxu0 0.0
    %149 = vmatpush2.msra.mxu0 0.0
    %150 = vmatprep.subr.mxu0 0.0
    %151 = vmatpush2.msra.mxu0 0.0
    %152 = vmatprep.subr.mxu0 0.0
    %153 = vmatpush2.msra.mxu0 0.0
    %154 = vmatprep.subr.mxu0 0.0
    %155 = vmatpush2.msra.mxu0 0.0
    %156 = vmatprep.subr.mxu0 0.0
    %157 = vmatpush2.msra.mxu0 0.0
    %158 = vmatprep.subr.mxu0 0.0
    %159 = vmatpush2.msra.mxu0 0.0
    %160 = vmatprep.subr.mxu0 0.0
    %161 = vmatpush2.msra.mxu0 0.0
    %162 = vmatprep.subr.mxu0 0.0
    %163 = vmatpush2.msra.mxu0 0.0
    %164 = vmatprep.subr.mxu0 0.0
    %165 = vmatpush2.msra.mxu0 0.0
    %166 = vmatprep.subr.mxu0 0.0
    %167 = vmatpush2.msra.mxu0 0.0
    %168 = vmatprep.subr.mxu0 0.0
    %169 = vmatpush2.msra.mxu0 0.0
    %170 = vmatprep.subr.mxu0 0.0
    %171 = vmatpush2.msra.mxu0 0.0
    %172 = vmatprep.subr.mxu0 0.0
    %173 = vmatpush2.msra.mxu0 0.0
    %174 = vmatprep.subr.mxu0 0.0
    %175 = vmatpush2.msra.mxu0 0.0
    %176 = vmatprep.subr.mxu0 0.0
    %177 = vmatpush2.msra.mxu0 0.0
    %178 = vmatprep.subr.mxu0 0.0
    %179 = vmatpush2.msra.mxu0 0.0
    %180 = vmatprep.mubr.f32.mxu0 0.0
    %181 = vmatmul.mubr.f32.gmra.mxu0 %v89
    %v182 = vpop.f32.mrf.mxu0
    %v183 = vadd.f32 %v85, %v182
    %v184 = vpop.f32.mrf.mxu0
    %185 = vmatprep.mubr.f32.mxu0 0.0
    %186 = vmatmul.mubr.f32.gmra.mxu0 %v92
    %v187 = vpop.f32.mrf.mxu0
    %v188 = vadd.f32 %v85, %v187
    %v189 = vpop.f32.mrf.mxu0
    %190 = vmatprep.mubr.f32.mxu0 0.0
    %191 = vmatmul.mubr.f32.gmra.mxu0 %v95
    %v192 = vpop.f32.mrf.mxu0
    %v193 = vadd.f32 %v85, %v192
    %v194 = vpop.f32.mrf.mxu0
    %195 = vmatprep.mubr.f32.mxu0 0.0
    %196 = vmatmul.mubr.f32.gmra.mxu0 %v98
    %v197 = vpop.f32.mrf.mxu0
    %v198 = vadd.f32 %v85, %v197
    %v199 = vpop.f32.mrf.mxu0
    %200 = vmatprep.mubr.f32.mxu0 0.0
    %201 = vmatmul.mubr.f32.gmra.mxu0 %v101
    %v202 = vpop.f32.mrf.mxu0
    %v203 = vadd.f32 %v85, %v202
    %v204 = vpop.f32.mrf.mxu0
    %205 = vmatprep.mubr.f32.mxu0 0.0
    %206 = vmatmul.mubr.f32.gmra.mxu0 %v104
    %v207 = vpop.f32.mrf.mxu0
    %v208 = vadd.f32 %v85, %v207
    %v209 = vpop.f32.mrf.mxu0
    %210 = vmatprep.mubr.f32.mxu0 0.0
    %211 = vmatmul.mubr.f32.gmra.mxu0 %v107
    %v212 = vpop.f32.mrf.mxu0
    %v213 = vadd.f32 %v85, %v212
    %v214 = vpop.f32.mrf.mxu0
    %215 = vmatprep.mubr.f32.mxu0 0.0
    %216 = vmatmul.mubr.f32.gmra.mxu0 %v110
    %v217 = vpop.f32.mrf.mxu0
    %v218 = vadd.f32 %v85, %v217
    %v219 = vpop.f32.mrf.mxu0
    %220 = vdwg.mxu0
    %v221 = vld [vmem:[%s5] sm:$0x1]
    %v223 = vlaneseq
    %v224 = vshrl.u32 %v223, 7
    %v225 = vsub.s32 0, %v224
    %v226 = vrot.slane %v221, %v225
    %vm228 = vcmask 523264
    %v230 = vsel %vm228, 0.0, 0
    %232 = vmatprep.subr.mxu0 0.0
    %233 = vmatpush1.msra.mxu0 0.0
    %234 = vmatprep.subr.mxu0 0.0
    %235 = vmatpush1.msra.mxu0 0.0
    %236 = vmatprep.subr.mxu0 0.0
    %237 = vmatpush1.msra.mxu0 0.0
    %238 = vmatprep.subr.mxu0 0.0
    %239 = vmatpush1.msra.mxu0 0.0
    %240 = vmatprep.subr.mxu0 0.0
    %241 = vmatpush1.msra.mxu0 0.0
    %242 = vmatprep.subr.mxu0 0.0
    %243 = vmatpush1.msra.mxu0 0.0
    %244 = vmatprep.subr.mxu0 0.0
    %245 = vmatpush1.msra.mxu0 0.0
    %246 = vmatprep.subr.mxu0 0.0
    %247 = vmatpush1.msra.mxu0 0.0
    %248 = vmatprep.subr.mxu0 %v59
    %249 = vmatpush1.msra.mxu0 %v58
    %250 = vmatprep.subr.mxu0 %v57
    %251 = vmatpush1.msra.mxu0 %v56
    %252 = vmatprep.subr.mxu0 %v55
    %253 = vmatpush1.msra.mxu0 %v54
    %254 = vmatprep.subr.mxu0 %v53
    %255 = vmatpush1.msra.mxu0 %v52
    %256 = vmatprep.subr.mxu0 %v51
    %257 = vmatpush1.msra.mxu0 %v50
    %258 = vmatprep.subr.mxu0 %v49
    %259 = vmatpush1.msra.mxu0 %v48
    %260 = vmatprep.subr.mxu0 %v47
    %261 = vmatpush1.msra.mxu0 %v46
    %262 = vmatprep.subr.mxu0 %v45
    %263 = vmatpush1.msra.mxu0 %v44
    %264 = vmatprep.subr.mxu0 0.0
    %265 = vmatpush2.msra.mxu0 0.0
    %266 = vmatprep.subr.mxu0 0.0
    %267 = vmatpush2.msra.mxu0 0.0
    %268 = vmatprep.subr.mxu0 0.0
    %269 = vmatpush2.msra.mxu0 0.0
    %270 = vmatprep.subr.mxu0 0.0
    %271 = vmatpush2.msra.mxu0 0.0
    %272 = vmatprep.subr.mxu0 0.0
    %273 = vmatpush2.msra.mxu0 0.0
    %274 = vmatprep.subr.mxu0 0.0
    %275 = vmatpush2.msra.mxu0 0.0
    %276 = vmatprep.subr.mxu0 0.0
    %277 = vmatpush2.msra.mxu0 0.0
    %278 = vmatprep.subr.mxu0 0.0
    %279 = vmatpush2.msra.mxu0 0.0
    %280 = vmatprep.subr.mxu0 0.0
    %281 = vmatpush2.msra.mxu0 0.0
    %282 = vmatprep.subr.mxu0 0.0
    %283 = vmatpush2.msra.mxu0 0.0
    %284 = vmatprep.subr.mxu0 0.0
    %285 = vmatpush2.msra.mxu0 0.0
    %286 = vmatprep.subr.mxu0 0.0
    %287 = vmatpush2.msra.mxu0 0.0
    %288 = vmatprep.subr.mxu0 0.0
    %289 = vmatpush2.msra.mxu0 0.0
    %290 = vmatprep.subr.mxu0 0.0
    %291 = vmatpush2.msra.mxu0 0.0
    %292 = vmatprep.subr.mxu0 0.0
    %293 = vmatpush2.msra.mxu0 0.0
    %294 = vmatprep.subr.mxu0 0.0
    %295 = vmatpush2.msra.mxu0 0.0
    %296 = vmatprep.mubr.f32.mxu0 0.0
    %297 = vmatmul.mubr.f32.gmra.mxu0 %v230
    %v298 = vpop.f32.mrf.mxu0
    %v299 = vadd.f32 0.0, %v298
    %v300 = vpop.f32.mrf.mxu0
    %v301 = vadd.f32 0.0, %v300
    %302 = vdwg.mxu0
    %v303 = vadd.f32 %v183, %v299
    %v304 = vmul.f32 %v303, %v69
    %v305 = vtanh.pop %v304
    %v306 = vmul.f32 %v305, %v69
    %v307 = vadd.f32 %v306, %v70
    %v308 = vmul.f32 %v307, 0.0
    %310 = vrot.lane.b32.xlu0 %v307, 64
    %v311 = vpop.permute.xlu0 %310
    %v313 = vmul.f32 %v307, %v311
    %315 = vrot.lane.b32.xlu0 %v313, 32
    %v316 = vpop.permute.xlu0 %315
    %v318 = vadd.f32 %v308, %v316
    %v319 = vtanh.pop %v318
    %321 = vrot.lane.b32.xlu0 %v319, 64
    %v322 = vpop.permute.xlu0 %321
    %v324 = vmul.f32 %v307, %v322
    %326 = vrot.lane.b32.xlu0 %v324, 32
    %v327 = vpop.permute.xlu0 %326
    %vm328 = vcmask 261120
    %v329 = vsel %vm328, %v327, 0
    %331 = vmatprep.subr.mxu0 0.0
    %332 = vmatpush1.msra.mxu0 0.0
    %333 = vmatprep.subr.mxu0 0.0
    %334 = vmatpush1.msra.mxu0 0.0
    %335 = vmatprep.subr.mxu0 0.0
    %336 = vmatpush1.msra.mxu0 0.0
    %337 = vmatprep.subr.mxu0 0.0
    %338 = vmatpush1.msra.mxu0 0.0
    %339 = vmatprep.subr.mxu0 0.0
    %340 = vmatpush1.msra.mxu0 0.0
    %341 = vmatprep.subr.mxu0 0.0
    %342 = vmatpush1.msra.mxu0 0.0
    %343 = vmatprep.subr.mxu0 0.0
    %344 = vmatpush1.msra.mxu0 0.0
    %345 = vmatprep.subr.mxu0 0.0
    %346 = vmatpush1.msra.mxu0 0.0
    %347 = vmatprep.subr.mxu0 0.0
    %348 = vmatpush1.msra.mxu0 0.0
    %349 = vmatprep.subr.mxu0 0.0
    %350 = vmatpush1.msra.mxu0 0.0
    %351 = vmatprep.subr.mxu0 0.0
    %352 = vmatpush1.msra.mxu0 0.0
    %353 = vmatprep.subr.mxu0 0.0
    %354 = vmatpush1.msra.mxu0 0.0
    %355 = vmatprep.subr.mxu0 0.0
    %356 = vmatpush1.msra.mxu0 %v63
    %357 = vmatprep.subr.mxu0 0.0
    %358 = vmatpush1.msra.mxu0 %v62
    %359 = vmatprep.subr.mxu0 0.0
    %360 = vmatpush1.msra.mxu0 %v61
    %361 = vmatprep.subr.mxu0 0.0
    %362 = vmatpush1.msra.mxu0 %v60
    %363 = vmatprep.subr.mxu0 0.0
    %364 = vmatpush2.msra.mxu0 0.0
    %365 = vmatprep.subr.mxu0 0.0
    %366 = vmatpush2.msra.mxu0 0.0
    %367 = vmatprep.subr.mxu0 0.0
    %368 = vmatpush2.msra.mxu0 0.0
    %369 = vmatprep.subr.mxu0 0.0
    %370 = vmatpush2.msra.mxu0 0.0
    %371 = vmatprep.subr.mxu0 0.0
    %372 = vmatpush2.msra.mxu0 0.0
    %373 = vmatprep.subr.mxu0 0.0
    %374 = vmatpush2.msra.mxu0 0.0
    %375 = vmatprep.subr.mxu0 0.0
    %376 = vmatpush2.msra.mxu0 0.0
    %377 = vmatprep.subr.mxu0 0.0
    %378 = vmatpush2.msra.mxu0 0.0
    %379 = vmatprep.subr.mxu0 0.0
    %380 = vmatpush2.msra.mxu0 0.0
    %381 = vmatprep.subr.mxu0 0.0
    %382 = vmatpush2.msra.mxu0 0.0
    %383 = vmatprep.subr.mxu0 0.0
    %384 = vmatpush2.msra.mxu0 0.0
    %385 = vmatprep.subr.mxu0 0.0
    %386 = vmatpush2.msra.mxu0 0.0
    %387 = vmatprep.subr.mxu0 0.0
    %388 = vmatpush2.msra.mxu0 0.0
    %389 = vmatprep.subr.mxu0 0.0
    %390 = vmatpush2.msra.mxu0 0.0
    %391 = vmatprep.subr.mxu0 0.0
    %392 = vmatpush2.msra.mxu0 0.0
    %393 = vmatprep.subr.mxu0 0.0
    %394 = vmatpush2.msra.mxu0 0.0
    %395 = vmatprep.mubr.f32.mxu0 0.0
    %396 = vmatmul.mubr.f32.gmra.mxu0 %v329
    %v397 = vpop.f32.mrf.mxu0
    %v398 = vadd.f32 %v226, %v397
    %v399 = vpop.f32.mrf.mxu0
    %400 = vdwg.mxu0
    %v401 = vadd.f32 %v398, %v301
    %v402 = vmul.f32 %v401, %v69
    %v403 = vtanh.pop %v402
    %v404 = vmul.f32 %v403, %v69
    %v405 = vadd.f32 %v404, %v70
    %v406 = vmul.f32 %v405, 0.0
    %408 = vrot.lane.b32.xlu0 %v405, 64
    %v409 = vpop.permute.xlu0 %408
    %v411 = vmul.f32 %v405, %v409
    %413 = vrot.lane.b32.xlu0 %v411, 32
    %v414 = vpop.permute.xlu0 %413
    %v416 = vadd.f32 %v406, %v414
    %v417 = vtanh.pop %v416
    %419 = vrot.lane.b32.xlu0 %v417, 64
    %v420 = vpop.permute.xlu0 %419
    %v422 = vmul.f32 %v405, %v420
    %425 = vrot.lane.b32.xlu0 %v422, 64
    %v426 = vpop.permute.xlu0 %425
    %v428 = vsel %vm328, %v327, %v426
    %v430 = vsel %vm228, %v428, 0
    %432 = vmatprep.subr.mxu0 0.0
    %433 = vmatpush1.msra.mxu0 0.0
    %434 = vmatprep.subr.mxu0 0.0
    %435 = vmatpush1.msra.mxu0 0.0
    %436 = vmatprep.subr.mxu0 0.0
    %437 = vmatpush1.msra.mxu0 0.0
    %438 = vmatprep.subr.mxu0 0.0
    %439 = vmatpush1.msra.mxu0 0.0
    %440 = vmatprep.subr.mxu0 0.0
    %441 = vmatpush1.msra.mxu0 0.0
    %442 = vmatprep.subr.mxu0 0.0
    %443 = vmatpush1.msra.mxu0 0.0
    %444 = vmatprep.subr.mxu0 0.0
    %445 = vmatpush1.msra.mxu0 0.0
    %446 = vmatprep.subr.mxu0 0.0
    %447 = vmatpush1.msra.mxu0 0.0
    %448 = vmatprep.subr.mxu0 %v59
    %449 = vmatpush1.msra.mxu0 %v58
    %450 = vmatprep.subr.mxu0 %v57
    %451 = vmatpush1.msra.mxu0 %v56
    %452 = vmatprep.subr.mxu0 %v55
    %453 = vmatpush1.msra.mxu0 %v54
    %454 = vmatprep.subr.mxu0 %v53
    %455 = vmatpush1.msra.mxu0 %v52
    %456 = vmatprep.subr.mxu0 %v51
    %457 = vmatpush1.msra.mxu0 %v50
    %458 = vmatprep.subr.mxu0 %v49
    %459 = vmatpush1.msra.mxu0 %v48
    %460 = vmatprep.subr.mxu0 %v47
    %461 = vmatpush1.msra.mxu0 %v46
    %462 = vmatprep.subr.mxu0 %v45
    %463 = vmatpush1.msra.mxu0 %v44
    %464 = vmatprep.subr.mxu0 0.0
    %465 = vmatpush2.msra.mxu0 0.0
    %466 = vmatprep.subr.mxu0 0.0
    %467 = vmatpush2.msra.mxu0 0.0
    %468 = vmatprep.subr.mxu0 0.0
    %469 = vmatpush2.msra.mxu0 0.0
    %470 = vmatprep.subr.mxu0 0.0
    %471 = vmatpush2.msra.mxu0 0.0
    %472 = vmatprep.subr.mxu0 0.0
    %473 = vmatpush2.msra.mxu0 0.0
    %474 = vmatprep.subr.mxu0 0.0
    %475 = vmatpush2.msra.mxu0 0.0
    %476 = vmatprep.subr.mxu0 0.0
    %477 = vmatpush2.msra.mxu0 0.0
    %478 = vmatprep.subr.mxu0 0.0
    %479 = vmatpush2.msra.mxu0 0.0
    %480 = vmatprep.subr.mxu0 0.0
    %481 = vmatpush2.msra.mxu0 0.0
    %482 = vmatprep.subr.mxu0 0.0
    %483 = vmatpush2.msra.mxu0 0.0
    %484 = vmatprep.subr.mxu0 0.0
    %485 = vmatpush2.msra.mxu0 0.0
    %486 = vmatprep.subr.mxu0 0.0
    %487 = vmatpush2.msra.mxu0 0.0
    %488 = vmatprep.subr.mxu0 0.0
    %489 = vmatpush2.msra.mxu0 0.0
    %490 = vmatprep.subr.mxu0 0.0
    %491 = vmatpush2.msra.mxu0 0.0
    %492 = vmatprep.subr.mxu0 0.0
    %493 = vmatpush2.msra.mxu0 0.0
    %494 = vmatprep.subr.mxu0 0.0
    %495 = vmatpush2.msra.mxu0 0.0
    %496 = vmatprep.mubr.f32.mxu0 0.0
    %497 = vmatmul.mubr.f32.gmra.mxu0 %v430
    %v498 = vpop.f32.mrf.mxu0
    %v499 = vadd.f32 0.0, %v498
    %v500 = vpop.f32.mrf.mxu0
    %v501 = vadd.f32 0.0, %v500
    %502 = vdwg.mxu0
    %v503 = vadd.f32 %v188, %v499
    %v504 = vmul.f32 %v503, %v69
    %v505 = vtanh.pop %v504
    %v506 = vmul.f32 %v505, %v69
    %v507 = vadd.f32 %v506, %v70
    %v508 = vmul.f32 %v507, %v318
    %510 = vrot.lane.b32.xlu0 %v507, 64
    %v511 = vpop.permute.xlu0 %510
    %v513 = vmul.f32 %v507, %v511
    %515 = vrot.lane.b32.xlu0 %v513, 32
    %v516 = vpop.permute.xlu0 %515
    %v518 = vadd.f32 %v508, %v516
    %v519 = vtanh.pop %v518
    %521 = vrot.lane.b32.xlu0 %v519, 64
    %v522 = vpop.permute.xlu0 %521
    %v524 = vmul.f32 %v507, %v522
    %526 = vrot.lane.b32.xlu0 %v524, 32
    %v527 = vpop.permute.xlu0 %526
    %v528 = vsel %vm328, %v527, 0
    %530 = vmatprep.subr.mxu0 0.0
    %531 = vmatpush1.msra.mxu0 0.0
    %532 = vmatprep.subr.mxu0 0.0
    %533 = vmatpush1.msra.mxu0 0.0
    %534 = vmatprep.subr.mxu0 0.0
    %535 = vmatpush1.msra.mxu0 0.0
    %536 = vmatprep.subr.mxu0 0.0
    %537 = vmatpush1.msra.mxu0 0.0
    %538 = vmatprep.subr.mxu0 0.0
    %539 = vmatpush1.msra.mxu0 0.0
    %540 = vmatprep.subr.mxu0 0.0
    %541 = vmatpush1.msra.mxu0 0.0
    %542 = vmatprep.subr.mxu0 0.0
    %543 = vmatpush1.msra.mxu0 0.0
    %544 = vmatprep.subr.mxu0 0.0
    %545 = vmatpush1.msra.mxu0 0.0
    %546 = vmatprep.subr.mxu0 0.0
    %547 = vmatpush1.msra.mxu0 0.0
    %548 = vmatprep.subr.mxu0 0.0
    %549 = vmatpush1.msra.mxu0 0.0
    %550 = vmatprep.subr.mxu0 0.0
    %551 = vmatpush1.msra.mxu0 0.0
    %552 = vmatprep.subr.mxu0 0.0
    %553 = vmatpush1.msra.mxu0 0.0
    %554 = vmatprep.subr.mxu0 0.0
    %555 = vmatpush1.msra.mxu0 %v63
    %556 = vmatprep.subr.mxu0 0.0
    %557 = vmatpush1.msra.mxu0 %v62
    %558 = vmatprep.subr.mxu0 0.0
    %559 = vmatpush1.msra.mxu0 %v61
    %560 = vmatprep.subr.mxu0 0.0
    %561 = vmatpush1.msra.mxu0 %v60
    %562 = vmatprep.subr.mxu0 0.0
    %563 = vmatpush2.msra.mxu0 0.0
    %564 = vmatprep.subr.mxu0 0.0
    %565 = vmatpush2.msra.mxu0 0.0
    %566 = vmatprep.subr.mxu0 0.0
    %567 = vmatpush2.msra.mxu0 0.0
    %568 = vmatprep.subr.mxu0 0.0
    %569 = vmatpush2.msra.mxu0 0.0
    %570 = vmatprep.subr.mxu0 0.0
    %571 = vmatpush2.msra.mxu0 0.0
    %572 = vmatprep.subr.mxu0 0.0
    %573 = vmatpush2.msra.mxu0 0.0
    %574 = vmatprep.subr.mxu0 0.0
    %575 = vmatpush2.msra.mxu0 0.0
    %576 = vmatprep.subr.mxu0 0.0
    %577 = vmatpush2.msra.mxu0 0.0
    %578 = vmatprep.subr.mxu0 0.0
    %579 = vmatpush2.msra.mxu0 0.0
    %580 = vmatprep.subr.mxu0 0.0
    %581 = vmatpush2.msra.mxu0 0.0
    %582 = vmatprep.subr.mxu0 0.0
    %583 = vmatpush2.msra.mxu0 0.0
    %584 = vmatprep.subr.mxu0 0.0
    %585 = vmatpush2.msra.mxu0 0.0
    %586 = vmatprep.subr.mxu0 0.0
    %587 = vmatpush2.msra.mxu0 0.0
    %588 = vmatprep.subr.mxu0 0.0
    %589 = vmatpush2.msra.mxu0 0.0
    %590 = vmatprep.subr.mxu0 0.0
    %591 = vmatpush2.msra.mxu0 0.0
    %592 = vmatprep.subr.mxu0 0.0
    %593 = vmatpush2.msra.mxu0 0.0
    %594 = vmatprep.mubr.f32.mxu0 0.0
    %595 = vmatmul.mubr.f32.gmra.mxu0 %v528
    %v596 = vpop.f32.mrf.mxu0
    %v597 = vadd.f32 %v226, %v596
    %v598 = vpop.f32.mrf.mxu0
    %599 = vdwg.mxu0
    %v600 = vadd.f32 %v597, %v501
    %v601 = vmul.f32 %v600, %v69
    %v602 = vtanh.pop %v601
    %v603 = vmul.f32 %v602, %v69
    %v604 = vadd.f32 %v603, %v70
    %v605 = vmul.f32 %v604, %v416
    %607 = vrot.lane.b32.xlu0 %v604, 64
    %v608 = vpop.permute.xlu0 %607
    %v610 = vmul.f32 %v604, %v608
    %612 = vrot.lane.b32.xlu0 %v610, 32
    %v613 = vpop.permute.xlu0 %612
    %v615 = vadd.f32 %v605, %v613
    %v616 = vtanh.pop %v615
    %618 = vrot.lane.b32.xlu0 %v616, 64
    %v619 = vpop.permute.xlu0 %618
    %v621 = vmul.f32 %v604, %v619
    %624 = vrot.lane.b32.xlu0 %v621, 64
    %v625 = vpop.permute.xlu0 %624
    %v627 = vsel %vm328, %v527, %v625
    %v629 = vsel %vm228, %v627, 0
    %631 = vmatprep.subr.mxu0 0.0
    %632 = vmatpush1.msra.mxu0 0.0
    %633 = vmatprep.subr.mxu0 0.0
    %634 = vmatpush1.msra.mxu0 0.0
    %635 = vmatprep.subr.mxu0 0.0
    %636 = vmatpush1.msra.mxu0 0.0
    %637 = vmatprep.subr.mxu0 0.0
    %638 = vmatpush1.msra.mxu0 0.0
    %639 = vmatprep.subr.mxu0 0.0
    %640 = vmatpush1.msra.mxu0 0.0
    %641 = vmatprep.subr.mxu0 0.0
    %642 = vmatpush1.msra.mxu0 0.0
    %643 = vmatprep.subr.mxu0 0.0
    %644 = vmatpush1.msra.mxu0 0.0
    %645 = vmatprep.subr.mxu0 0.0
    %646 = vmatpush1.msra.mxu0 0.0
    %647 = vmatprep.subr.mxu0 %v59
    %648 = vmatpush1.msra.mxu0 %v58
    %649 = vmatprep.subr.mxu0 %v57
    %650 = vmatpush1.msra.mxu0 %v56
    %651 = vmatprep.subr.mxu0 %v55
    %652 = vmatpush1.msra.mxu0 %v54
    %653 = vmatprep.subr.mxu0 %v53
    %654 = vmatpush1.msra.mxu0 %v52
    %655 = vmatprep.subr.mxu0 %v51
    %656 = vmatpush1.msra.mxu0 %v50
    %657 = vmatprep.subr.mxu0 %v49
    %658 = vmatpush1.msra.mxu0 %v48
    %659 = vmatprep.subr.mxu0 %v47
    %660 = vmatpush1.msra.mxu0 %v46
    %661 = vmatprep.subr.mxu0 %v45
    %662 = vmatpush1.msra.mxu0 %v44
    %663 = vmatprep.subr.mxu0 0.0
    %664 = vmatpush2.msra.mxu0 0.0
    %665 = vmatprep.subr.mxu0 0.0
    %666 = vmatpush2.msra.mxu0 0.0
    %667 = vmatprep.subr.mxu0 0.0
    %668 = vmatpush2.msra.mxu0 0.0
    %669 = vmatprep.subr.mxu0 0.0
    %670 = vmatpush2.msra.mxu0 0.0
    %671 = vmatprep.subr.mxu0 0.0
    %672 = vmatpush2.msra.mxu0 0.0
    %673 = vmatprep.subr.mxu0 0.0
    %674 = vmatpush2.msra.mxu0 0.0
    %675 = vmatprep.subr.mxu0 0.0
    %676 = vmatpush2.msra.mxu0 0.0
    %677 = vmatprep.subr.mxu0 0.0
    %678 = vmatpush2.msra.mxu0 0.0
    %679 = vmatprep.subr.mxu0 0.0
    %680 = vmatpush2.msra.mxu0 0.0
    %681 = vmatprep.subr.mxu0 0.0
    %682 = vmatpush2.msra.mxu0 0.0
    %683 = vmatprep.subr.mxu0 0.0
    %684 = vmatpush2.msra.mxu0 0.0
    %685 = vmatprep.subr.mxu0 0.0
    %686 = vmatpush2.msra.mxu0 0.0
    %687 = vmatprep.subr.mxu0 0.0
    %688 = vmatpush2.msra.mxu0 0.0
    %689 = vmatprep.subr.mxu0 0.0
    %690 = vmatpush2.msra.mxu0 0.0
    %691 = vmatprep.subr.mxu0 0.0
    %692 = vmatpush2.msra.mxu0 0.0
    %693 = vmatprep.subr.mxu0 0.0
    %694 = vmatpush2.msra.mxu0 0.0
    %695 = vmatprep.mubr.f32.mxu0 0.0
    %696 = vmatmul.mubr.f32.gmra.mxu0 %v629
    %v697 = vpop.f32.mrf.mxu0
    %v698 = vadd.f32 0.0, %v697
    %v699 = vpop.f32.mrf.mxu0
    %v700 = vadd.f32 0.0, %v699
    %701 = vdwg.mxu0
    %v702 = vadd.f32 %v193, %v698
    %v703 = vmul.f32 %v702, %v69
    %v704 = vtanh.pop %v703
    %v705 = vmul.f32 %v704, %v69
    %v706 = vadd.f32 %v705, %v70
    %v707 = vmul.f32 %v706, %v518
    %709 = vrot.lane.b32.xlu0 %v706, 64
    %v710 = vpop.permute.xlu0 %709
    %v712 = vmul.f32 %v706, %v710
    %714 = vrot.lane.b32.xlu0 %v712, 32
    %v715 = vpop.permute.xlu0 %714
    %v717 = vadd.f32 %v707, %v715
    %v718 = vtanh.pop %v717
    %720 = vrot.lane.b32.xlu0 %v718, 64
    %v721 = vpop.permute.xlu0 %720
    %v723 = vmul.f32 %v706, %v721
    %725 = vrot.lane.b32.xlu0 %v723, 32
    %v726 = vpop.permute.xlu0 %725
    %v727 = vsel %vm328, %v726, 0
    %729 = vmatprep.subr.mxu0 0.0
    %730 = vmatpush1.msra.mxu0 0.0
    %731 = vmatprep.subr.mxu0 0.0
    %732 = vmatpush1.msra.mxu0 0.0
    %733 = vmatprep.subr.mxu0 0.0
    %734 = vmatpush1.msra.mxu0 0.0
    %735 = vmatprep.subr.mxu0 0.0
    %736 = vmatpush1.msra.mxu0 0.0
    %737 = vmatprep.subr.mxu0 0.0
    %738 = vmatpush1.msra.mxu0 0.0
    %739 = vmatprep.subr.mxu0 0.0
    %740 = vmatpush1.msra.mxu0 0.0
    %741 = vmatprep.subr.mxu0 0.0
    %742 = vmatpush1.msra.mxu0 0.0
    %743 = vmatprep.subr.mxu0 0.0
    %744 = vmatpush1.msra.mxu0 0.0
    %745 = vmatprep.subr.mxu0 0.0
    %746 = vmatpush1.msra.mxu0 0.0
    %747 = vmatprep.subr.mxu0 0.0
    %748 = vmatpush1.msra.mxu0 0.0
    %749 = vmatprep.subr.mxu0 0.0
    %750 = vmatpush1.msra.mxu0 0.0
    %751 = vmatprep.subr.mxu0 0.0
    %752 = vmatpush1.msra.mxu0 0.0
    %753 = vmatprep.subr.mxu0 0.0
    %754 = vmatpush1.msra.mxu0 %v63
    %755 = vmatprep.subr.mxu0 0.0
    %756 = vmatpush1.msra.mxu0 %v62
    %757 = vmatprep.subr.mxu0 0.0
    %758 = vmatpush1.msra.mxu0 %v61
    %759 = vmatprep.subr.mxu0 0.0
    %760 = vmatpush1.msra.mxu0 %v60
    %761 = vmatprep.subr.mxu0 0.0
    %762 = vmatpush2.msra.mxu0 0.0
    %763 = vmatprep.subr.mxu0 0.0
    %764 = vmatpush2.msra.mxu0 0.0
    %765 = vmatprep.subr.mxu0 0.0
    %766 = vmatpush2.msra.mxu0 0.0
    %767 = vmatprep.subr.mxu0 0.0
    %768 = vmatpush2.msra.mxu0 0.0
    %769 = vmatprep.subr.mxu0 0.0
    %770 = vmatpush2.msra.mxu0 0.0
    %771 = vmatprep.subr.mxu0 0.0
    %772 = vmatpush2.msra.mxu0 0.0
    %773 = vmatprep.subr.mxu0 0.0
    %774 = vmatpush2.msra.mxu0 0.0
    %775 = vmatprep.subr.mxu0 0.0
    %776 = vmatpush2.msra.mxu0 0.0
    %777 = vmatprep.subr.mxu0 0.0
    %778 = vmatpush2.msra.mxu0 0.0
    %779 = vmatprep.subr.mxu0 0.0
    %780 = vmatpush2.msra.mxu0 0.0
    %781 = vmatprep.subr.mxu0 0.0
    %782 = vmatpush2.msra.mxu0 0.0
    %783 = vmatprep.subr.mxu0 0.0
    %784 = vmatpush2.msra.mxu0 0.0
    %785 = vmatprep.subr.mxu0 0.0
    %786 = vmatpush2.msra.mxu0 0.0
    %787 = vmatprep.subr.mxu0 0.0
    %788 = vmatpush2.msra.mxu0 0.0
    %789 = vmatprep.subr.mxu0 0.0
    %790 = vmatpush2.msra.mxu0 0.0
    %791 = vmatprep.subr.mxu0 0.0
    %792 = vmatpush2.msra.mxu0 0.0
    %793 = vmatprep.mubr.f32.mxu0 0.0
    %794 = vmatmul.mubr.f32.gmra.mxu0 %v727
    %v795 = vpop.f32.mrf.mxu0
    %v796 = vadd.f32 %v226, %v795
    %v797 = vpop.f32.mrf.mxu0
    %798 = vdwg.mxu0
    %v799 = vadd.f32 %v796, %v700
    %v800 = vmul.f32 %v799, %v69
    %v801 = vtanh.pop %v800
    %v802 = vmul.f32 %v801, %v69
    %v803 = vadd.f32 %v802, %v70
    %v804 = vmul.f32 %v803, %v615
    %806 = vrot.lane.b32.xlu0 %v803, 64
    %v807 = vpop.permute.xlu0 %806
    %v809 = vmul.f32 %v803, %v807
    %811 = vrot.lane.b32.xlu0 %v809, 32
    %v812 = vpop.permute.xlu0 %811
    %v814 = vadd.f32 %v804, %v812
    %v815 = vtanh.pop %v814
    %817 = vrot.lane.b32.xlu0 %v815, 64
    %v818 = vpop.permute.xlu0 %817
    %v820 = vmul.f32 %v803, %v818
    %823 = vrot.lane.b32.xlu0 %v820, 64
    %v824 = vpop.permute.xlu0 %823
    %v826 = vsel %vm328, %v726, %v824
    %v828 = vsel %vm228, %v826, 0
    %830 = vmatprep.subr.mxu0 0.0
    %831 = vmatpush1.msra.mxu0 0.0
    %832 = vmatprep.subr.mxu0 0.0
    %833 = vmatpush1.msra.mxu0 0.0
    %834 = vmatprep.subr.mxu0 0.0
    %835 = vmatpush1.msra.mxu0 0.0
    %836 = vmatprep.subr.mxu0 0.0
    %837 = vmatpush1.msra.mxu0 0.0
    %838 = vmatprep.subr.mxu0 0.0
    %839 = vmatpush1.msra.mxu0 0.0
    %840 = vmatprep.subr.mxu0 0.0
    %841 = vmatpush1.msra.mxu0 0.0
    %842 = vmatprep.subr.mxu0 0.0
    %843 = vmatpush1.msra.mxu0 0.0
    %844 = vmatprep.subr.mxu0 0.0
    %845 = vmatpush1.msra.mxu0 0.0
    %846 = vmatprep.subr.mxu0 %v59
    %847 = vmatpush1.msra.mxu0 %v58
    %848 = vmatprep.subr.mxu0 %v57
    %849 = vmatpush1.msra.mxu0 %v56
    %850 = vmatprep.subr.mxu0 %v55
    %851 = vmatpush1.msra.mxu0 %v54
    %852 = vmatprep.subr.mxu0 %v53
    %853 = vmatpush1.msra.mxu0 %v52
    %854 = vmatprep.subr.mxu0 %v51
    %855 = vmatpush1.msra.mxu0 %v50
    %856 = vmatprep.subr.mxu0 %v49
    %857 = vmatpush1.msra.mxu0 %v48
    %858 = vmatprep.subr.mxu0 %v47
    %859 = vmatpush1.msra.mxu0 %v46
    %860 = vmatprep.subr.mxu0 %v45
    %861 = vmatpush1.msra.mxu0 %v44
    %862 = vmatprep.subr.mxu0 0.0
    %863 = vmatpush2.msra.mxu0 0.0
    %864 = vmatprep.subr.mxu0 0.0
    %865 = vmatpush2.msra.mxu0 0.0
    %866 = vmatprep.subr.mxu0 0.0
    %867 = vmatpush2.msra.mxu0 0.0
    %868 = vmatprep.subr.mxu0 0.0
    %869 = vmatpush2.msra.mxu0 0.0
    %870 = vmatprep.subr.mxu0 0.0
    %871 = vmatpush2.msra.mxu0 0.0
    %872 = vmatprep.subr.mxu0 0.0
    %873 = vmatpush2.msra.mxu0 0.0
    %874 = vmatprep.subr.mxu0 0.0
    %875 = vmatpush2.msra.mxu0 0.0
    %876 = vmatprep.subr.mxu0 0.0
    %877 = vmatpush2.msra.mxu0 0.0
    %878 = vmatprep.subr.mxu0 0.0
    %879 = vmatpush2.msra.mxu0 0.0
    %880 = vmatprep.subr.mxu0 0.0
    %881 = vmatpush2.msra.mxu0 0.0
    %882 = vmatprep.subr.mxu0 0.0
    %883 = vmatpush2.msra.mxu0 0.0
    %884 = vmatprep.subr.mxu0 0.0
    %885 = vmatpush2.msra.mxu0 0.0
    %886 = vmatprep.subr.mxu0 0.0
    %887 = vmatpush2.msra.mxu0 0.0
    %888 = vmatprep.subr.mxu0 0.0
    %889 = vmatpush2.msra.mxu0 0.0
    %890 = vmatprep.subr.mxu0 0.0
    %891 = vmatpush2.msra.mxu0 0.0
    %892 = vmatprep.subr.mxu0 0.0
    %893 = vmatpush2.msra.mxu0 0.0
    %894 = vmatprep.mubr.f32.mxu0 0.0
    %895 = vmatmul.mubr.f32.gmra.mxu0 %v828
    %v896 = vpop.f32.mrf.mxu0
    %v897 = vadd.f32 0.0, %v896
    %v898 = vpop.f32.mrf.mxu0
    %v899 = vadd.f32 0.0, %v898
    %900 = vdwg.mxu0
    %v901 = vadd.f32 %v198, %v897
    %v902 = vmul.f32 %v901, %v69
    %v903 = vtanh.pop %v902
    %v904 = vmul.f32 %v903, %v69
    %v905 = vadd.f32 %v904, %v70
    %v906 = vmul.f32 %v905, %v717
    %908 = vrot.lane.b32.xlu0 %v905, 64
    %v909 = vpop.permute.xlu0 %908
    %v911 = vmul.f32 %v905, %v909
    %913 = vrot.lane.b32.xlu0 %v911, 32
    %v914 = vpop.permute.xlu0 %913
    %v916 = vadd.f32 %v906, %v914
    %v917 = vtanh.pop %v916
    %919 = vrot.lane.b32.xlu0 %v917, 64
    %v920 = vpop.permute.xlu0 %919
    %v922 = vmul.f32 %v905, %v920
    %924 = vrot.lane.b32.xlu0 %v922, 32
    %v925 = vpop.permute.xlu0 %924
    %v926 = vsel %vm328, %v925, 0
    %928 = vmatprep.subr.mxu0 0.0
    %929 = vmatpush1.msra.mxu0 0.0
    %930 = vmatprep.subr.mxu0 0.0
    %931 = vmatpush1.msra.mxu0 0.0
    %932 = vmatprep.subr.mxu0 0.0
    %933 = vmatpush1.msra.mxu0 0.0
    %934 = vmatprep.subr.mxu0 0.0
    %935 = vmatpush1.msra.mxu0 0.0
    %936 = vmatprep.subr.mxu0 0.0
    %937 = vmatpush1.msra.mxu0 0.0
    %938 = vmatprep.subr.mxu0 0.0
    %939 = vmatpush1.msra.mxu0 0.0
    %940 = vmatprep.subr.mxu0 0.0
    %941 = vmatpush1.msra.mxu0 0.0
    %942 = vmatprep.subr.mxu0 0.0
    %943 = vmatpush1.msra.mxu0 0.0
    %944 = vmatprep.subr.mxu0 0.0
    %945 = vmatpush1.msra.mxu0 0.0
    %946 = vmatprep.subr.mxu0 0.0
    %947 = vmatpush1.msra.mxu0 0.0
    %948 = vmatprep.subr.mxu0 0.0
    %949 = vmatpush1.msra.mxu0 0.0
    %950 = vmatprep.subr.mxu0 0.0
    %951 = vmatpush1.msra.mxu0 0.0
    %952 = vmatprep.subr.mxu0 0.0
    %953 = vmatpush1.msra.mxu0 %v63
    %954 = vmatprep.subr.mxu0 0.0
    %955 = vmatpush1.msra.mxu0 %v62
    %956 = vmatprep.subr.mxu0 0.0
    %957 = vmatpush1.msra.mxu0 %v61
    %958 = vmatprep.subr.mxu0 0.0
    %959 = vmatpush1.msra.mxu0 %v60
    %960 = vmatprep.subr.mxu0 0.0
    %961 = vmatpush2.msra.mxu0 0.0
    %962 = vmatprep.subr.mxu0 0.0
    %963 = vmatpush2.msra.mxu0 0.0
    %964 = vmatprep.subr.mxu0 0.0
    %965 = vmatpush2.msra.mxu0 0.0
    %966 = vmatprep.subr.mxu0 0.0
    %967 = vmatpush2.msra.mxu0 0.0
    %968 = vmatprep.subr.mxu0 0.0
    %969 = vmatpush2.msra.mxu0 0.0
    %970 = vmatprep.subr.mxu0 0.0
    %971 = vmatpush2.msra.mxu0 0.0
    %972 = vmatprep.subr.mxu0 0.0
    %973 = vmatpush2.msra.mxu0 0.0
    %974 = vmatprep.subr.mxu0 0.0
    %975 = vmatpush2.msra.mxu0 0.0
    %976 = vmatprep.subr.mxu0 0.0
    %977 = vmatpush2.msra.mxu0 0.0
    %978 = vmatprep.subr.mxu0 0.0
    %979 = vmatpush2.msra.mxu0 0.0
    %980 = vmatprep.subr.mxu0 0.0
    %981 = vmatpush2.msra.mxu0 0.0
    %982 = vmatprep.subr.mxu0 0.0
    %983 = vmatpush2.msra.mxu0 0.0
    %984 = vmatprep.subr.mxu0 0.0
    %985 = vmatpush2.msra.mxu0 0.0
    %986 = vmatprep.subr.mxu0 0.0
    %987 = vmatpush2.msra.mxu0 0.0
    %988 = vmatprep.subr.mxu0 0.0
    %989 = vmatpush2.msra.mxu0 0.0
    %990 = vmatprep.subr.mxu0 0.0
    %991 = vmatpush2.msra.mxu0 0.0
    %992 = vmatprep.mubr.f32.mxu0 0.0
    %993 = vmatmul.mubr.f32.gmra.mxu0 %v926
    %v994 = vpop.f32.mrf.mxu0
    %v995 = vadd.f32 %v226, %v994
    %v996 = vpop.f32.mrf.mxu0
    %997 = vdwg.mxu0
    %v998 = vadd.f32 %v995, %v899
    %v999 = vmul.f32 %v998, %v69
    %v1000 = vtanh.pop %v999
    %v1001 = vmul.f32 %v1000, %v69
    %v1002 = vadd.f32 %v1001, %v70
    %v1003 = vmul.f32 %v1002, %v814
    %1005 = vrot.lane.b32.xlu0 %v1002, 64
    %v1006 = vpop.permute.xlu0 %1005
    %v1008 = vmul.f32 %v1002, %v1006
    %1010 = vrot.lane.b32.xlu0 %v1008, 32
    %v1011 = vpop.permute.xlu0 %1010
    %v1013 = vadd.f32 %v1003, %v1011
    %v1014 = vtanh.pop %v1013
    %1016 = vrot.lane.b32.xlu0 %v1014, 64
    %v1017 = vpop.permute.xlu0 %1016
    %v1019 = vmul.f32 %v1002, %v1017
    %1022 = vrot.lane.b32.xlu0 %v1019, 64
    %v1023 = vpop.permute.xlu0 %1022
    %v1025 = vsel %vm328, %v925, %v1023
    %v1027 = vsel %vm228, %v1025, 0
    %1029 = vmatprep.subr.mxu0 0.0
    %1030 = vmatpush1.msra.mxu0 0.0
    %1031 = vmatprep.subr.mxu0 0.0
    %1032 = vmatpush1.msra.mxu0 0.0
    %1033 = vmatprep.subr.mxu0 0.0
    %1034 = vmatpush1.msra.mxu0 0.0
    %1035 = vmatprep.subr.mxu0 0.0
    %1036 = vmatpush1.msra.mxu0 0.0
    %1037 = vmatprep.subr.mxu0 0.0
    %1038 = vmatpush1.msra.mxu0 0.0
    %1039 = vmatprep.subr.mxu0 0.0
    %1040 = vmatpush1.msra.mxu0 0.0
    %1041 = vmatprep.subr.mxu0 0.0
    %1042 = vmatpush1.msra.mxu0 0.0
    %1043 = vmatprep.subr.mxu0 0.0
    %1044 = vmatpush1.msra.mxu0 0.0
    %1045 = vmatprep.subr.mxu0 %v59
    %1046 = vmatpush1.msra.mxu0 %v58
    %1047 = vmatprep.subr.mxu0 %v57
    %1048 = vmatpush1.msra.mxu0 %v56
    %1049 = vmatprep.subr.mxu0 %v55
    %1050 = vmatpush1.msra.mxu0 %v54
    %1051 = vmatprep.subr.mxu0 %v53
    %1052 = vmatpush1.msra.mxu0 %v52
    %1053 = vmatprep.subr.mxu0 %v51
    %1054 = vmatpush1.msra.mxu0 %v50
    %1055 = vmatprep.subr.mxu0 %v49
    %1056 = vmatpush1.msra.mxu0 %v48
    %1057 = vmatprep.subr.mxu0 %v47
    %1058 = vmatpush1.msra.mxu0 %v46
    %1059 = vmatprep.subr.mxu0 %v45
    %1060 = vmatpush1.msra.mxu0 %v44
    %1061 = vmatprep.subr.mxu0 0.0
    %1062 = vmatpush2.msra.mxu0 0.0
    %1063 = vmatprep.subr.mxu0 0.0
    %1064 = vmatpush2.msra.mxu0 0.0
    %1065 = vmatprep.subr.mxu0 0.0
    %1066 = vmatpush2.msra.mxu0 0.0
    %1067 = vmatprep.subr.mxu0 0.0
    %1068 = vmatpush2.msra.mxu0 0.0
    %1069 = vmatprep.subr.mxu0 0.0
    %1070 = vmatpush2.msra.mxu0 0.0
    %1071 = vmatprep.subr.mxu0 0.0
    %1072 = vmatpush2.msra.mxu0 0.0
    %1073 = vmatprep.subr.mxu0 0.0
    %1074 = vmatpush2.msra.mxu0 0.0
    %1075 = vmatprep.subr.mxu0 0.0
    %1076 = vmatpush2.msra.mxu0 0.0
    %1077 = vmatprep.subr.mxu0 0.0
    %1078 = vmatpush2.msra.mxu0 0.0
    %1079 = vmatprep.subr.mxu0 0.0
    %1080 = vmatpush2.msra.mxu0 0.0
    %1081 = vmatprep.subr.mxu0 0.0
    %1082 = vmatpush2.msra.mxu0 0.0
    %1083 = vmatprep.subr.mxu0 0.0
    %1084 = vmatpush2.msra.mxu0 0.0
    %1085 = vmatprep.subr.mxu0 0.0
    %1086 = vmatpush2.msra.mxu0 0.0
    %1087 = vmatprep.subr.mxu0 0.0
    %1088 = vmatpush2.msra.mxu0 0.0
    %1089 = vmatprep.subr.mxu0 0.0
    %1090 = vmatpush2.msra.mxu0 0.0
    %1091 = vmatprep.subr.mxu0 0.0
    %1092 = vmatpush2.msra.mxu0 0.0
    %1093 = vmatprep.mubr.f32.mxu0 0.0
    %1094 = vmatmul.mubr.f32.gmra.mxu0 %v1027
    %v1095 = vpop.f32.mrf.mxu0
    %v1096 = vadd.f32 0.0, %v1095
    %v1097 = vpop.f32.mrf.mxu0
    %v1098 = vadd.f32 0.0, %v1097
    %1099 = vdwg.mxu0
    %v1100 = vadd.f32 %v203, %v1096
    %v1101 = vmul.f32 %v1100, %v69
    %v1102 = vtanh.pop %v1101
    %v1103 = vmul.f32 %v1102, %v69
    %v1104 = vadd.f32 %v1103, %v70
    %v1105 = vmul.f32 %v1104, %v916
    %1107 = vrot.lane.b32.xlu0 %v1104, 64
    %v1108 = vpop.permute.xlu0 %1107
    %v1110 = vmul.f32 %v1104, %v1108
    %1112 = vrot.lane.b32.xlu0 %v1110, 32
    %v1113 = vpop.permute.xlu0 %1112
    %v1115 = vadd.f32 %v1105, %v1113
    %v1116 = vtanh.pop %v1115
    %1118 = vrot.lane.b32.xlu0 %v1116, 64
    %v1119 = vpop.permute.xlu0 %1118
    %v1121 = vmul.f32 %v1104, %v1119
    %1123 = vrot.lane.b32.xlu0 %v1121, 32
    %v1124 = vpop.permute.xlu0 %1123
    %v1125 = vsel %vm328, %v1124, 0
    %1127 = vmatprep.subr.mxu0 0.0
    %1128 = vmatpush1.msra.mxu0 0.0
    %1129 = vmatprep.subr.mxu0 0.0
    %1130 = vmatpush1.msra.mxu0 0.0
    %1131 = vmatprep.subr.mxu0 0.0
    %1132 = vmatpush1.msra.mxu0 0.0
    %1133 = vmatprep.subr.mxu0 0.0
    %1134 = vmatpush1.msra.mxu0 0.0
    %1135 = vmatprep.subr.mxu0 0.0
    %1136 = vmatpush1.msra.mxu0 0.0
    %1137 = vmatprep.subr.mxu0 0.0
    %1138 = vmatpush1.msra.mxu0 0.0
    %1139 = vmatprep.subr.mxu0 0.0
    %1140 = vmatpush1.msra.mxu0 0.0
    %1141 = vmatprep.subr.mxu0 0.0
    %1142 = vmatpush1.msra.mxu0 0.0
    %1143 = vmatprep.subr.mxu0 0.0
    %1144 = vmatpush1.msra.mxu0 0.0
    %1145 = vmatprep.subr.mxu0 0.0
    %1146 = vmatpush1.msra.mxu0 0.0
    %1147 = vmatprep.subr.mxu0 0.0
    %1148 = vmatpush1.msra.mxu0 0.0
    %1149 = vmatprep.subr.mxu0 0.0
    %1150 = vmatpush1.msra.mxu0 0.0
    %1151 = vmatprep.subr.mxu0 0.0
    %1152 = vmatpush1.msra.mxu0 %v63
    %1153 = vmatprep.subr.mxu0 0.0
    %1154 = vmatpush1.msra.mxu0 %v62
    %1155 = vmatprep.subr.mxu0 0.0
    %1156 = vmatpush1.msra.mxu0 %v61
    %1157 = vmatprep.subr.mxu0 0.0
    %1158 = vmatpush1.msra.mxu0 %v60
    %1159 = vmatprep.subr.mxu0 0.0
    %1160 = vmatpush2.msra.mxu0 0.0
    %1161 = vmatprep.subr.mxu0 0.0
    %1162 = vmatpush2.msra.mxu0 0.0
    %1163 = vmatprep.subr.mxu0 0.0
    %1164 = vmatpush2.msra.mxu0 0.0
    %1165 = vmatprep.subr.mxu0 0.0
    %1166 = vmatpush2.msra.mxu0 0.0
    %1167 = vmatprep.subr.mxu0 0.0
    %1168 = vmatpush2.msra.mxu0 0.0
    %1169 = vmatprep.subr.mxu0 0.0
    %1170 = vmatpush2.msra.mxu0 0.0
    %1171 = vmatprep.subr.mxu0 0.0
    %1172 = vmatpush2.msra.mxu0 0.0
    %1173 = vmatprep.subr.mxu0 0.0
    %1174 = vmatpush2.msra.mxu0 0.0
    %1175 = vmatprep.subr.mxu0 0.0
    %1176 = vmatpush2.msra.mxu0 0.0
    %1177 = vmatprep.subr.mxu0 0.0
    %1178 = vmatpush2.msra.mxu0 0.0
    %1179 = vmatprep.subr.mxu0 0.0
    %1180 = vmatpush2.msra.mxu0 0.0
    %1181 = vmatprep.subr.mxu0 0.0
    %1182 = vmatpush2.msra.mxu0 0.0
    %1183 = vmatprep.subr.mxu0 0.0
    %1184 = vmatpush2.msra.mxu0 0.0
    %1185 = vmatprep.subr.mxu0 0.0
    %1186 = vmatpush2.msra.mxu0 0.0
    %1187 = vmatprep.subr.mxu0 0.0
    %1188 = vmatpush2.msra.mxu0 0.0
    %1189 = vmatprep.subr.mxu0 0.0
    %1190 = vmatpush2.msra.mxu0 0.0
    %1191 = vmatprep.mubr.f32.mxu0 0.0
    %1192 = vmatmul.mubr.f32.gmra.mxu0 %v1125
    %v1193 = vpop.f32.mrf.mxu0
    %v1194 = vadd.f32 %v226, %v1193
    %v1195 = vpop.f32.mrf.mxu0
    %1196 = vdwg.mxu0
    %v1197 = vadd.f32 %v1194, %v1098
    %v1198 = vmul.f32 %v1197, %v69
    %v1199 = vtanh.pop %v1198
    %v1200 = vmul.f32 %v1199, %v69
    %v1201 = vadd.f32 %v1200, %v70
    %v1202 = vmul.f32 %v1201, %v1013
    %1204 = vrot.lane.b32.xlu0 %v1201, 64
    %v1205 = vpop.permute.xlu0 %1204
    %v1207 = vmul.f32 %v1201, %v1205
    %1209 = vrot.lane.b32.xlu0 %v1207, 32
    %v1210 = vpop.permute.xlu0 %1209
    %v1212 = vadd.f32 %v1202, %v1210
    %v1213 = vtanh.pop %v1212
    %1215 = vrot.lane.b32.xlu0 %v1213, 64
    %v1216 = vpop.permute.xlu0 %1215
    %v1218 = vmul.f32 %v1201, %v1216
    %1221 = vrot.lane.b32.xlu0 %v1218, 64
    %v1222 = vpop.permute.xlu0 %1221
    %v1224 = vsel %vm328, %v1124, %v1222
    %v1226 = vsel %vm228, %v1224, 0
    %1228 = vmatprep.subr.mxu0 0.0
    %1229 = vmatpush1.msra.mxu0 0.0
    %1230 = vmatprep.subr.mxu0 0.0
    %1231 = vmatpush1.msra.mxu0 0.0
    %1232 = vmatprep.subr.mxu0 0.0
    %1233 = vmatpush1.msra.mxu0 0.0
    %1234 = vmatprep.subr.mxu0 0.0
    %1235 = vmatpush1.msra.mxu0 0.0
    %1236 = vmatprep.subr.mxu0 0.0
    %1237 = vmatpush1.msra.mxu0 0.0
    %1238 = vmatprep.subr.mxu0 0.0
    %1239 = vmatpush1.msra.mxu0 0.0
    %1240 = vmatprep.subr.mxu0 0.0
    %1241 = vmatpush1.msra.mxu0 0.0
    %1242 = vmatprep.subr.mxu0 0.0
    %1243 = vmatpush1.msra.mxu0 0.0
    %1244 = vmatprep.subr.mxu0 %v59
    %1245 = vmatpush1.msra.mxu0 %v58
    %1246 = vmatprep.subr.mxu0 %v57
    %1247 = vmatpush1.msra.mxu0 %v56
    %1248 = vmatprep.subr.mxu0 %v55
    %1249 = vmatpush1.msra.mxu0 %v54
    %1250 = vmatprep.subr.mxu0 %v53
    %1251 = vmatpush1.msra.mxu0 %v52
    %1252 = vmatprep.subr.mxu0 %v51
    %1253 = vmatpush1.msra.mxu0 %v50
    %1254 = vmatprep.subr.mxu0 %v49
    %1255 = vmatpush1.msra.mxu0 %v48
    %1256 = vmatprep.subr.mxu0 %v47
    %1257 = vmatpush1.msra.mxu0 %v46
    %1258 = vmatprep.subr.mxu0 %v45
    %1259 = vmatpush1.msra.mxu0 %v44
    %1260 = vmatprep.subr.mxu0 0.0
    %1261 = vmatpush2.msra.mxu0 0.0
    %1262 = vmatprep.subr.mxu0 0.0
    %1263 = vmatpush2.msra.mxu0 0.0
    %1264 = vmatprep.subr.mxu0 0.0
    %1265 = vmatpush2.msra.mxu0 0.0
    %1266 = vmatprep.subr.mxu0 0.0
    %1267 = vmatpush2.msra.mxu0 0.0
    %1268 = vmatprep.subr.mxu0 0.0
    %1269 = vmatpush2.msra.mxu0 0.0
    %1270 = vmatprep.subr.mxu0 0.0
    %1271 = vmatpush2.msra.mxu0 0.0
    %1272 = vmatprep.subr.mxu0 0.0
    %1273 = vmatpush2.msra.mxu0 0.0
    %1274 = vmatprep.subr.mxu0 0.0
    %1275 = vmatpush2.msra.mxu0 0.0
    %1276 = vmatprep.subr.mxu0 0.0
    %1277 = vmatpush2.msra.mxu0 0.0
    %1278 = vmatprep.subr.mxu0 0.0
    %1279 = vmatpush2.msra.mxu0 0.0
    %1280 = vmatprep.subr.mxu0 0.0
    %1281 = vmatpush2.msra.mxu0 0.0
    %1282 = vmatprep.subr.mxu0 0.0
    %1283 = vmatpush2.msra.mxu0 0.0
    %1284 = vmatprep.subr.mxu0 0.0
    %1285 = vmatpush2.msra.mxu0 0.0
    %1286 = vmatprep.subr.mxu0 0.0
    %1287 = vmatpush2.msra.mxu0 0.0
    %1288 = vmatprep.subr.mxu0 0.0
    %1289 = vmatpush2.msra.mxu0 0.0
    %1290 = vmatprep.subr.mxu0 0.0
    %1291 = vmatpush2.msra.mxu0 0.0
    %1292 = vmatprep.mubr.f32.mxu0 0.0
    %1293 = vmatmul.mubr.f32.gmra.mxu0 %v1226
    %v1294 = vpop.f32.mrf.mxu0
    %v1295 = vadd.f32 0.0, %v1294
    %v1296 = vpop.f32.mrf.mxu0
    %v1297 = vadd.f32 0.0, %v1296
    %1298 = vdwg.mxu0
    %v1299 = vadd.f32 %v208, %v1295
    %v1300 = vmul.f32 %v1299, %v69
    %v1301 = vtanh.pop %v1300
    %v1302 = vmul.f32 %v1301, %v69
    %v1303 = vadd.f32 %v1302, %v70
    %v1304 = vmul.f32 %v1303, %v1115
    %1306 = vrot.lane.b32.xlu0 %v1303, 64
    %v1307 = vpop.permute.xlu0 %1306
    %v1309 = vmul.f32 %v1303, %v1307
    %1311 = vrot.lane.b32.xlu0 %v1309, 32
    %v1312 = vpop.permute.xlu0 %1311
    %v1314 = vadd.f32 %v1304, %v1312
    %v1315 = vtanh.pop %v1314
    %1317 = vrot.lane.b32.xlu0 %v1315, 64
    %v1318 = vpop.permute.xlu0 %1317
    %v1320 = vmul.f32 %v1303, %v1318
    %1322 = vrot.lane.b32.xlu0 %v1320, 32
    %v1323 = vpop.permute.xlu0 %1322
    %v1324 = vsel %vm328, %v1323, 0
    %1326 = vmatprep.subr.mxu0 0.0
    %1327 = vmatpush1.msra.mxu0 0.0
    %1328 = vmatprep.subr.mxu0 0.0
    %1329 = vmatpush1.msra.mxu0 0.0
    %1330 = vmatprep.subr.mxu0 0.0
    %1331 = vmatpush1.msra.mxu0 0.0
    %1332 = vmatprep.subr.mxu0 0.0
    %1333 = vmatpush1.msra.mxu0 0.0
    %1334 = vmatprep.subr.mxu0 0.0
    %1335 = vmatpush1.msra.mxu0 0.0
    %1336 = vmatprep.subr.mxu0 0.0
    %1337 = vmatpush1.msra.mxu0 0.0
    %1338 = vmatprep.subr.mxu0 0.0
    %1339 = vmatpush1.msra.mxu0 0.0
    %1340 = vmatprep.subr.mxu0 0.0
    %1341 = vmatpush1.msra.mxu0 0.0
    %1342 = vmatprep.subr.mxu0 0.0
    %1343 = vmatpush1.msra.mxu0 0.0
    %1344 = vmatprep.subr.mxu0 0.0
    %1345 = vmatpush1.msra.mxu0 0.0
    %1346 = vmatprep.subr.mxu0 0.0
    %1347 = vmatpush1.msra.mxu0 0.0
    %1348 = vmatprep.subr.mxu0 0.0
    %1349 = vmatpush1.msra.mxu0 0.0
    %1350 = vmatprep.subr.mxu0 0.0
    %1351 = vmatpush1.msra.mxu0 %v63
    %1352 = vmatprep.subr.mxu0 0.0
    %1353 = vmatpush1.msra.mxu0 %v62
    %1354 = vmatprep.subr.mxu0 0.0
    %1355 = vmatpush1.msra.mxu0 %v61
    %1356 = vmatprep.subr.mxu0 0.0
    %1357 = vmatpush1.msra.mxu0 %v60
    %1358 = vmatprep.subr.mxu0 0.0
    %1359 = vmatpush2.msra.mxu0 0.0
    %1360 = vmatprep.subr.mxu0 0.0
    %1361 = vmatpush2.msra.mxu0 0.0
    %1362 = vmatprep.subr.mxu0 0.0
    %1363 = vmatpush2.msra.mxu0 0.0
    %1364 = vmatprep.subr.mxu0 0.0
    %1365 = vmatpush2.msra.mxu0 0.0
    %1366 = vmatprep.subr.mxu0 0.0
    %1367 = vmatpush2.msra.mxu0 0.0
    %1368 = vmatprep.subr.mxu0 0.0
    %1369 = vmatpush2.msra.mxu0 0.0
    %1370 = vmatprep.subr.mxu0 0.0
    %1371 = vmatpush2.msra.mxu0 0.0
    %1372 = vmatprep.subr.mxu0 0.0
    %1373 = vmatpush2.msra.mxu0 0.0
    %1374 = vmatprep.subr.mxu0 0.0
    %1375 = vmatpush2.msra.mxu0 0.0
    %1376 = vmatprep.subr.mxu0 0.0
    %1377 = vmatpush2.msra.mxu0 0.0
    %1378 = vmatprep.subr.mxu0 0.0
    %1379 = vmatpush2.msra.mxu0 0.0
    %1380 = vmatprep.subr.mxu0 0.0
    %1381 = vmatpush2.msra.mxu0 0.0
    %1382 = vmatprep.subr.mxu0 0.0
    %1383 = vmatpush2.msra.mxu0 0.0
    %1384 = vmatprep.subr.mxu0 0.0
    %1385 = vmatpush2.msra.mxu0 0.0
    %1386 = vmatprep.subr.mxu0 0.0
    %1387 = vmatpush2.msra.mxu0 0.0
    %1388 = vmatprep.subr.mxu0 0.0
    %1389 = vmatpush2.msra.mxu0 0.0
    %1390 = vmatprep.mubr.f32.mxu0 0.0
    %1391 = vmatmul.mubr.f32.gmra.mxu0 %v1324
    %v1392 = vpop.f32.mrf.mxu0
    %v1393 = vadd.f32 %v226, %v1392
    %v1394 = vpop.f32.mrf.mxu0
    %1395 = vdwg.mxu0
    %v1396 = vadd.f32 %v1393, %v1297
    %v1397 = vmul.f32 %v1396, %v69
    %v1398 = vtanh.pop %v1397
    %v1399 = vmul.f32 %v1398, %v69
    %v1400 = vadd.f32 %v1399, %v70
    %v1401 = vmul.f32 %v1400, %v1212
    %1403 = vrot.lane.b32.xlu0 %v1400, 64
    %v1404 = vpop.permute.xlu0 %1403
    %v1406 = vmul.f32 %v1400, %v1404
    %1408 = vrot.lane.b32.xlu0 %v1406, 32
    %v1409 = vpop.permute.xlu0 %1408
    %v1411 = vadd.f32 %v1401, %v1409
    %v1412 = vtanh.pop %v1411
    %1414 = vrot.lane.b32.xlu0 %v1412, 64
    %v1415 = vpop.permute.xlu0 %1414
    %v1417 = vmul.f32 %v1400, %v1415
    %1420 = vrot.lane.b32.xlu0 %v1417, 64
    %v1421 = vpop.permute.xlu0 %1420
    %v1423 = vsel %vm328, %v1323, %v1421
    %v1425 = vsel %vm228, %v1423, 0
    %1427 = vmatprep.subr.mxu0 0.0
    %1428 = vmatpush1.msra.mxu0 0.0
    %1429 = vmatprep.subr.mxu0 0.0
    %1430 = vmatpush1.msra.mxu0 0.0
    %1431 = vmatprep.subr.mxu0 0.0
    %1432 = vmatpush1.msra.mxu0 0.0
    %1433 = vmatprep.subr.mxu0 0.0
    %1434 = vmatpush1.msra.mxu0 0.0
    %1435 = vmatprep.subr.mxu0 0.0
    %1436 = vmatpush1.msra.mxu0 0.0
    %1437 = vmatprep.subr.mxu0 0.0
    %1438 = vmatpush1.msra.mxu0 0.0
    %1439 = vmatprep.subr.mxu0 0.0
    %1440 = vmatpush1.msra.mxu0 0.0
    %1441 = vmatprep.subr.mxu0 0.0
    %1442 = vmatpush1.msra.mxu0 0.0
    %1443 = vmatprep.subr.mxu0 %v59
    %1444 = vmatpush1.msra.mxu0 %v58
    %1445 = vmatprep.subr.mxu0 %v57
    %1446 = vmatpush1.msra.mxu0 %v56
    %1447 = vmatprep.subr.mxu0 %v55
    %1448 = vmatpush1.msra.mxu0 %v54
    %1449 = vmatprep.subr.mxu0 %v53
    %1450 = vmatpush1.msra.mxu0 %v52
    %1451 = vmatprep.subr.mxu0 %v51
    %1452 = vmatpush1.msra.mxu0 %v50
    %1453 = vmatprep.subr.mxu0 %v49
    %1454 = vmatpush1.msra.mxu0 %v48
    %1455 = vmatprep.subr.mxu0 %v47
    %1456 = vmatpush1.msra.mxu0 %v46
    %1457 = vmatprep.subr.mxu0 %v45
    %1458 = vmatpush1.msra.mxu0 %v44
    %1459 = vmatprep.subr.mxu0 0.0
    %1460 = vmatpush2.msra.mxu0 0.0
    %1461 = vmatprep.subr.mxu0 0.0
    %1462 = vmatpush2.msra.mxu0 0.0
    %1463 = vmatprep.subr.mxu0 0.0
    %1464 = vmatpush2.msra.mxu0 0.0
    %1465 = vmatprep.subr.mxu0 0.0
    %1466 = vmatpush2.msra.mxu0 0.0
    %1467 = vmatprep.subr.mxu0 0.0
    %1468 = vmatpush2.msra.mxu0 0.0
    %1469 = vmatprep.subr.mxu0 0.0
    %1470 = vmatpush2.msra.mxu0 0.0
    %1471 = vmatprep.subr.mxu0 0.0
    %1472 = vmatpush2.msra.mxu0 0.0
    %1473 = vmatprep.subr.mxu0 0.0
    %1474 = vmatpush2.msra.mxu0 0.0
    %1475 = vmatprep.subr.mxu0 0.0
    %1476 = vmatpush2.msra.mxu0 0.0
    %1477 = vmatprep.subr.mxu0 0.0
    %1478 = vmatpush2.msra.mxu0 0.0
    %1479 = vmatprep.subr.mxu0 0.0
    %1480 = vmatpush2.msra.mxu0 0.0
    %1481 = vmatprep.subr.mxu0 0.0
    %1482 = vmatpush2.msra.mxu0 0.0
    %1483 = vmatprep.subr.mxu0 0.0
    %1484 = vmatpush2.msra.mxu0 0.0
    %1485 = vmatprep.subr.mxu0 0.0
    %1486 = vmatpush2.msra.mxu0 0.0
    %1487 = vmatprep.subr.mxu0 0.0
    %1488 = vmatpush2.msra.mxu0 0.0
    %1489 = vmatprep.subr.mxu0 0.0
    %1490 = vmatpush2.msra.mxu0 0.0
    %1491 = vmatprep.mubr.f32.mxu0 0.0
    %1492 = vmatmul.mubr.f32.gmra.mxu0 %v1425
    %v1493 = vpop.f32.mrf.mxu0
    %v1494 = vadd.f32 0.0, %v1493
    %v1495 = vpop.f32.mrf.mxu0
    %v1496 = vadd.f32 0.0, %v1495
    %1497 = vdwg.mxu0
    %v1498 = vadd.f32 %v213, %v1494
    %v1499 = vmul.f32 %v1498, %v69
    %v1500 = vtanh.pop %v1499
    %v1501 = vmul.f32 %v1500, %v69
    %v1502 = vadd.f32 %v1501, %v70
    %v1503 = vmul.f32 %v1502, %v1314
    %1505 = vrot.lane.b32.xlu0 %v1502, 64
    %v1506 = vpop.permute.xlu0 %1505
    %v1508 = vmul.f32 %v1502, %v1506
    %1510 = vrot.lane.b32.xlu0 %v1508, 32
    %v1511 = vpop.permute.xlu0 %1510
    %v1513 = vadd.f32 %v1503, %v1511
    %v1514 = vtanh.pop %v1513
    %1516 = vrot.lane.b32.xlu0 %v1514, 64
    %v1517 = vpop.permute.xlu0 %1516
    %v1519 = vmul.f32 %v1502, %v1517
    %1521 = vrot.lane.b32.xlu0 %v1519, 32
    %v1522 = vpop.permute.xlu0 %1521
    %v1523 = vsel %vm328, %v1522, 0
    %1525 = vmatprep.subr.mxu0 0.0
    %1526 = vmatpush1.msra.mxu0 0.0
    %1527 = vmatprep.subr.mxu0 0.0
    %1528 = vmatpush1.msra.mxu0 0.0
    %1529 = vmatprep.subr.mxu0 0.0
    %1530 = vmatpush1.msra.mxu0 0.0
    %1531 = vmatprep.subr.mxu0 0.0
    %1532 = vmatpush1.msra.mxu0 0.0
    %1533 = vmatprep.subr.mxu0 0.0
    %1534 = vmatpush1.msra.mxu0 0.0
    %1535 = vmatprep.subr.mxu0 0.0
    %1536 = vmatpush1.msra.mxu0 0.0
    %1537 = vmatprep.subr.mxu0 0.0
    %1538 = vmatpush1.msra.mxu0 0.0
    %1539 = vmatprep.subr.mxu0 0.0
    %1540 = vmatpush1.msra.mxu0 0.0
    %1541 = vmatprep.subr.mxu0 0.0
    %1542 = vmatpush1.msra.mxu0 0.0
    %1543 = vmatprep.subr.mxu0 0.0
    %1544 = vmatpush1.msra.mxu0 0.0
    %1545 = vmatprep.subr.mxu0 0.0
    %1546 = vmatpush1.msra.mxu0 0.0
    %1547 = vmatprep.subr.mxu0 0.0
    %1548 = vmatpush1.msra.mxu0 0.0
    %1549 = vmatprep.subr.mxu0 0.0
    %1550 = vmatpush1.msra.mxu0 %v63
    %1551 = vmatprep.subr.mxu0 0.0
    %1552 = vmatpush1.msra.mxu0 %v62
    %1553 = vmatprep.subr.mxu0 0.0
    %1554 = vmatpush1.msra.mxu0 %v61
    %1555 = vmatprep.subr.mxu0 0.0
    %1556 = vmatpush1.msra.mxu0 %v60
    %1557 = vmatprep.subr.mxu0 0.0
    %1558 = vmatpush2.msra.mxu0 0.0
    %1559 = vmatprep.subr.mxu0 0.0
    %1560 = vmatpush2.msra.mxu0 0.0
    %1561 = vmatprep.subr.mxu0 0.0
    %1562 = vmatpush2.msra.mxu0 0.0
    %1563 = vmatprep.subr.mxu0 0.0
    %1564 = vmatpush2.msra.mxu0 0.0
    %1565 = vmatprep.subr.mxu0 0.0
    %1566 = vmatpush2.msra.mxu0 0.0
    %1567 = vmatprep.subr.mxu0 0.0
    %1568 = vmatpush2.msra.mxu0 0.0
    %1569 = vmatprep.subr.mxu0 0.0
    %1570 = vmatpush2.msra.mxu0 0.0
    %1571 = vmatprep.subr.mxu0 0.0
    %1572 = vmatpush2.msra.mxu0 0.0
    %1573 = vmatprep.subr.mxu0 0.0
    %1574 = vmatpush2.msra.mxu0 0.0
    %1575 = vmatprep.subr.mxu0 0.0
    %1576 = vmatpush2.msra.mxu0 0.0
    %1577 = vmatprep.subr.mxu0 0.0
    %1578 = vmatpush2.msra.mxu0 0.0
    %1579 = vmatprep.subr.mxu0 0.0
    %1580 = vmatpush2.msra.mxu0 0.0
    %1581 = vmatprep.subr.mxu0 0.0
    %1582 = vmatpush2.msra.mxu0 0.0
    %1583 = vmatprep.subr.mxu0 0.0
    %1584 = vmatpush2.msra.mxu0 0.0
    %1585 = vmatprep.subr.mxu0 0.0
    %1586 = vmatpush2.msra.mxu0 0.0
    %1587 = vmatprep.subr.mxu0 0.0
    %1588 = vmatpush2.msra.mxu0 0.0
    %1589 = vmatprep.mubr.f32.mxu0 0.0
    %1590 = vmatmul.mubr.f32.gmra.mxu0 %v1523
    %v1591 = vpop.f32.mrf.mxu0
    %v1592 = vadd.f32 %v226, %v1591
    %v1593 = vpop.f32.mrf.mxu0
    %1594 = vdwg.mxu0
    %v1595 = vadd.f32 %v1592, %v1496
    %v1596 = vmul.f32 %v1595, %v69
    %v1597 = vtanh.pop %v1596
    %v1598 = vmul.f32 %v1597, %v69
    %v1599 = vadd.f32 %v1598, %v70
    %v1600 = vmul.f32 %v1599, %v1411
    %1602 = vrot.lane.b32.xlu0 %v1599, 64
    %v1603 = vpop.permute.xlu0 %1602
    %v1605 = vmul.f32 %v1599, %v1603
    %1607 = vrot.lane.b32.xlu0 %v1605, 32
    %v1608 = vpop.permute.xlu0 %1607
    %v1610 = vadd.f32 %v1600, %v1608
    %v1611 = vtanh.pop %v1610
    %1613 = vrot.lane.b32.xlu0 %v1611, 64
    %v1614 = vpop.permute.xlu0 %1613
    %v1616 = vmul.f32 %v1599, %v1614
    %1619 = vrot.lane.b32.xlu0 %v1616, 64
    %v1620 = vpop.permute.xlu0 %1619
    %v1622 = vsel %vm328, %v1522, %v1620
    %v1624 = vsel %vm228, %v1622, 0
    %1626 = vmatprep.subr.mxu0 0.0
    %1627 = vmatpush1.msra.mxu0 0.0
    %1628 = vmatprep.subr.mxu0 0.0
    %1629 = vmatpush1.msra.mxu0 0.0
    %1630 = vmatprep.subr.mxu0 0.0
    %1631 = vmatpush1.msra.mxu0 0.0
    %1632 = vmatprep.subr.mxu0 0.0
    %1633 = vmatpush1.msra.mxu0 0.0
    %1634 = vmatprep.subr.mxu0 0.0
    %1635 = vmatpush1.msra.mxu0 0.0
    %1636 = vmatprep.subr.mxu0 0.0
    %1637 = vmatpush1.msra.mxu0 0.0
    %1638 = vmatprep.subr.mxu0 0.0
    %1639 = vmatpush1.msra.mxu0 0.0
    %1640 = vmatprep.subr.mxu0 0.0
    %1641 = vmatpush1.msra.mxu0 0.0
    %1642 = vmatprep.subr.mxu0 %v59
    %1643 = vmatpush1.msra.mxu0 %v58
    %1644 = vmatprep.subr.mxu0 %v57
    %1645 = vmatpush1.msra.mxu0 %v56
    %1646 = vmatprep.subr.mxu0 %v55
    %1647 = vmatpush1.msra.mxu0 %v54
    %1648 = vmatprep.subr.mxu0 %v53
    %1649 = vmatpush1.msra.mxu0 %v52
    %1650 = vmatprep.subr.mxu0 %v51
    %1651 = vmatpush1.msra.mxu0 %v50
    %1652 = vmatprep.subr.mxu0 %v49
    %1653 = vmatpush1.msra.mxu0 %v48
    %1654 = vmatprep.subr.mxu0 %v47
    %1655 = vmatpush1.msra.mxu0 %v46
    %1656 = vmatprep.subr.mxu0 %v45
    %1657 = vmatpush1.msra.mxu0 %v44
    %1658 = vmatprep.subr.mxu0 0.0
    %1659 = vmatpush2.msra.mxu0 0.0
    %1660 = vmatprep.subr.mxu0 0.0
    %1661 = vmatpush2.msra.mxu0 0.0
    %1662 = vmatprep.subr.mxu0 0.0
    %1663 = vmatpush2.msra.mxu0 0.0
    %1664 = vmatprep.subr.mxu0 0.0
    %1665 = vmatpush2.msra.mxu0 0.0
    %1666 = vmatprep.subr.mxu0 0.0
    %1667 = vmatpush2.msra.mxu0 0.0
    %1668 = vmatprep.subr.mxu0 0.0
    %1669 = vmatpush2.msra.mxu0 0.0
    %1670 = vmatprep.subr.mxu0 0.0
    %1671 = vmatpush2.msra.mxu0 0.0
    %1672 = vmatprep.subr.mxu0 0.0
    %1673 = vmatpush2.msra.mxu0 0.0
    %1674 = vmatprep.subr.mxu0 0.0
    %1675 = vmatpush2.msra.mxu0 0.0
    %1676 = vmatprep.subr.mxu0 0.0
    %1677 = vmatpush2.msra.mxu0 0.0
    %1678 = vmatprep.subr.mxu0 0.0
    %1679 = vmatpush2.msra.mxu0 0.0
    %1680 = vmatprep.subr.mxu0 0.0
    %1681 = vmatpush2.msra.mxu0 0.0
    %1682 = vmatprep.subr.mxu0 0.0
    %1683 = vmatpush2.msra.mxu0 0.0
    %1684 = vmatprep.subr.mxu0 0.0
    %1685 = vmatpush2.msra.mxu0 0.0
    %1686 = vmatprep.subr.mxu0 0.0
    %1687 = vmatpush2.msra.mxu0 0.0
    %1688 = vmatprep.subr.mxu0 0.0
    %1689 = vmatpush2.msra.mxu0 0.0
    %1690 = vmatprep.mubr.f32.mxu0 0.0
    %1691 = vmatmul.mubr.f32.gmra.mxu0 %v1624
    %v1692 = vpop.f32.mrf.mxu0
    %v1693 = vadd.f32 0.0, %v1692
    %v1694 = vpop.f32.mrf.mxu0
    %v1695 = vadd.f32 0.0, %v1694
    %1696 = vdwg.mxu0
    %v1697 = vadd.f32 %v218, %v1693
    %v1698 = vmul.f32 %v1697, %v69
    %v1699 = vtanh.pop %v1698
    %v1700 = vmul.f32 %v1699, %v69
    %v1701 = vadd.f32 %v1700, %v70
    %v1702 = vmul.f32 %v1701, %v1513
    %1704 = vrot.lane.b32.xlu0 %v1701, 64
    %v1705 = vpop.permute.xlu0 %1704
    %v1707 = vmul.f32 %v1701, %v1705
    %1709 = vrot.lane.b32.xlu0 %v1707, 32
    %v1710 = vpop.permute.xlu0 %1709
    %v1712 = vadd.f32 %v1702, %v1710
    %v1713 = vtanh.pop %v1712
    %1715 = vrot.lane.b32.xlu0 %v1713, 64
    %v1716 = vpop.permute.xlu0 %1715
    %v1718 = vmul.f32 %v1701, %v1716
    %1720 = vrot.lane.b32.xlu0 %v1718, 32
    %v1721 = vpop.permute.xlu0 %1720
    %v1722 = vsel %vm328, %v1721, 0
    %1724 = vmatprep.subr.mxu0 0.0
    %1725 = vmatpush1.msra.mxu0 0.0
    %1726 = vmatprep.subr.mxu0 0.0
    %1727 = vmatpush1.msra.mxu0 0.0
    %1728 = vmatprep.subr.mxu0 0.0
    %1729 = vmatpush1.msra.mxu0 0.0
    %1730 = vmatprep.subr.mxu0 0.0
    %1731 = vmatpush1.msra.mxu0 0.0
    %1732 = vmatprep.subr.mxu0 0.0
    %1733 = vmatpush1.msra.mxu0 0.0
    %1734 = vmatprep.subr.mxu0 0.0
    %1735 = vmatpush1.msra.mxu0 0.0
    %1736 = vmatprep.subr.mxu0 0.0
    %1737 = vmatpush1.msra.mxu0 0.0
    %1738 = vmatprep.subr.mxu0 0.0
    %1739 = vmatpush1.msra.mxu0 0.0
    %1740 = vmatprep.subr.mxu0 0.0
    %1741 = vmatpush1.msra.mxu0 0.0
    %1742 = vmatprep.subr.mxu0 0.0
    %1743 = vmatpush1.msra.mxu0 0.0
    %1744 = vmatprep.subr.mxu0 0.0
    %1745 = vmatpush1.msra.mxu0 0.0
    %1746 = vmatprep.subr.mxu0 0.0
    %1747 = vmatpush1.msra.mxu0 0.0
    %1748 = vmatprep.subr.mxu0 0.0
    %1749 = vmatpush1.msra.mxu0 %v63
    %1750 = vmatprep.subr.mxu0 0.0
    %1751 = vmatpush1.msra.mxu0 %v62
    %1752 = vmatprep.subr.mxu0 0.0
    %1753 = vmatpush1.msra.mxu0 %v61
    %1754 = vmatprep.subr.mxu0 0.0
    %1755 = vmatpush1.msra.mxu0 %v60
    %1756 = vmatprep.subr.mxu0 0.0
    %1757 = vmatpush2.msra.mxu0 0.0
    %1758 = vmatprep.subr.mxu0 0.0
    %1759 = vmatpush2.msra.mxu0 0.0
    %1760 = vmatprep.subr.mxu0 0.0
    %1761 = vmatpush2.msra.mxu0 0.0
    %1762 = vmatprep.subr.mxu0 0.0
    %1763 = vmatpush2.msra.mxu0 0.0
    %1764 = vmatprep.subr.mxu0 0.0
    %1765 = vmatpush2.msra.mxu0 0.0
    %1766 = vmatprep.subr.mxu0 0.0
    %1767 = vmatpush2.msra.mxu0 0.0
    %1768 = vmatprep.subr.mxu0 0.0
    %1769 = vmatpush2.msra.mxu0 0.0
    %1770 = vmatprep.subr.mxu0 0.0
    %1771 = vmatpush2.msra.mxu0 0.0
    %1772 = vmatprep.subr.mxu0 0.0
    %1773 = vmatpush2.msra.mxu0 0.0
    %1774 = vmatprep.subr.mxu0 0.0
    %1775 = vmatpush2.msra.mxu0 0.0
    %1776 = vmatprep.subr.mxu0 0.0
    %1777 = vmatpush2.msra.mxu0 0.0
    %1778 = vmatprep.subr.mxu0 0.0
    %1779 = vmatpush2.msra.mxu0 0.0
    %1780 = vmatprep.subr.mxu0 0.0
    %1781 = vmatpush2.msra.mxu0 0.0
    %1782 = vmatprep.subr.mxu0 0.0
    %1783 = vmatpush2.msra.mxu0 0.0
    %1784 = vmatprep.subr.mxu0 0.0
    %1785 = vmatpush2.msra.mxu0 0.0
    %1786 = vmatprep.subr.mxu0 0.0
    %1787 = vmatpush2.msra.mxu0 0.0
    %1788 = vmatprep.mubr.f32.mxu0 0.0
    %1789 = vmatmul.mubr.f32.gmra.mxu0 %v1722
    %v1790 = vpop.f32.mrf.mxu0
    %v1791 = vadd.f32 %v226, %v1790
    %v1792 = vpop.f32.mrf.mxu0
    %1793 = vdwg.mxu0
    %v1794 = vadd.f32 %v1791, %v1695
    %v1795 = vmul.f32 %v1794, %v69
    %v1796 = vtanh.pop %v1795
    %v1797 = vmul.f32 %v1796, %v69
    %v1798 = vadd.f32 %v1797, %v70
    %v1799 = vmul.f32 %v1798, %v1610
    %1801 = vrot.lane.b32.xlu0 %v1798, 64
    %v1802 = vpop.permute.xlu0 %1801
    %v1804 = vmul.f32 %v1798, %v1802
    %1806 = vrot.lane.b32.xlu0 %v1804, 32
    %v1807 = vpop.permute.xlu0 %1806
    %v1809 = vadd.f32 %v1799, %v1807
    %v1810 = vtanh.pop %v1809
    %1812 = vrot.lane.b32.xlu0 %v1810, 64
    %v1813 = vpop.permute.xlu0 %1812
    %v1815 = vmul.f32 %v1798, %v1813
    %v1816 = vld [vmem:[%s6] sm:$0xff]
    %v1817 = vld [vmem:[%s6 + $0x8] sm:$0xff]
    %v1818 = vld [vmem:[%s6 + $0x10] sm:$0xff]
    %v1819 = vld [vmem:[%s6 + $0x18] sm:$0xff]
    %v1820 = vld [vmem:[%s7] sm:$0x1]
    %v1822 = vlaneseq
    %v1823 = vshrl.u32 %v1822, 7
    %v1824 = vsub.s32 0, %v1823
    %v1825 = vrot.slane %v1820, %v1824
    %1828 = vrot.lane.b32.xlu0 %v1815, 32
    %v1829 = vpop.permute.xlu0 %1828
    %v1830 = vsel %vm328, %v1829, 0
    %1832 = vmatprep.subr.mxu0 0.0
    %1833 = vmatpush1.msra.mxu0 0.0
    %1834 = vmatprep.subr.mxu0 0.0
    %1835 = vmatpush1.msra.mxu0 0.0
    %1836 = vmatprep.subr.mxu0 0.0
    %1837 = vmatpush1.msra.mxu0 0.0
    %1838 = vmatprep.subr.mxu0 0.0
    %1839 = vmatpush1.msra.mxu0 0.0
    %1840 = vmatprep.subr.mxu0 0.0
    %1841 = vmatpush1.msra.mxu0 0.0
    %1842 = vmatprep.subr.mxu0 0.0
    %1843 = vmatpush1.msra.mxu0 0.0
    %1844 = vmatprep.subr.mxu0 0.0
    %1845 = vmatpush1.msra.mxu0 0.0
    %1846 = vmatprep.subr.mxu0 0.0
    %1847 = vmatpush1.msra.mxu0 0.0
    %1848 = vmatprep.subr.mxu0 0.0
    %1849 = vmatpush1.msra.mxu0 0.0
    %1850 = vmatprep.subr.mxu0 0.0
    %1851 = vmatpush1.msra.mxu0 0.0
    %1852 = vmatprep.subr.mxu0 0.0
    %1853 = vmatpush1.msra.mxu0 0.0
    %1854 = vmatprep.subr.mxu0 0.0
    %1855 = vmatpush1.msra.mxu0 0.0
    %1856 = vmatprep.subr.mxu0 0.0
    %1857 = vmatpush1.msra.mxu0 %v1819
    %1858 = vmatprep.subr.mxu0 0.0
    %1859 = vmatpush1.msra.mxu0 %v1818
    %1860 = vmatprep.subr.mxu0 0.0
    %1861 = vmatpush1.msra.mxu0 %v1817
    %1862 = vmatprep.subr.mxu0 0.0
    %1863 = vmatpush1.msra.mxu0 %v1816
    %1864 = vmatprep.subr.mxu0 0.0
    %1865 = vmatpush2.msra.mxu0 0.0
    %1866 = vmatprep.subr.mxu0 0.0
    %1867 = vmatpush2.msra.mxu0 0.0
    %1868 = vmatprep.subr.mxu0 0.0
    %1869 = vmatpush2.msra.mxu0 0.0
    %1870 = vmatprep.subr.mxu0 0.0
    %1871 = vmatpush2.msra.mxu0 0.0
    %1872 = vmatprep.subr.mxu0 0.0
    %1873 = vmatpush2.msra.mxu0 0.0
    %1874 = vmatprep.subr.mxu0 0.0
    %1875 = vmatpush2.msra.mxu0 0.0
    %1876 = vmatprep.subr.mxu0 0.0
    %1877 = vmatpush2.msra.mxu0 0.0
    %1878 = vmatprep.subr.mxu0 0.0
    %1879 = vmatpush2.msra.mxu0 0.0
    %1880 = vmatprep.subr.mxu0 0.0
    %1881 = vmatpush2.msra.mxu0 0.0
    %1882 = vmatprep.subr.mxu0 0.0
    %1883 = vmatpush2.msra.mxu0 0.0
    %1884 = vmatprep.subr.mxu0 0.0
    %1885 = vmatpush2.msra.mxu0 0.0
    %1886 = vmatprep.subr.mxu0 0.0
    %1887 = vmatpush2.msra.mxu0 0.0
    %1888 = vmatprep.subr.mxu0 0.0
    %1889 = vmatpush2.msra.mxu0 0.0
    %1890 = vmatprep.subr.mxu0 0.0
    %1891 = vmatpush2.msra.mxu0 0.0
    %1892 = vmatprep.subr.mxu0 0.0
    %1893 = vmatpush2.msra.mxu0 0.0
    %1894 = vmatprep.subr.mxu0 0.0
    %1895 = vmatpush2.msra.mxu0 0.0
    %1896 = vmatprep.mubr.f32.mxu0 0.0
    %1897 = vmatmul.mubr.f32.gmra.mxu0 %v1830
    %v1898 = vpop.f32.mrf.mxu0
    %v1899 = vadd.f32 %v1825, %v1898
    %v1900 = vpop.f32.mrf.mxu0
    %1901 = vdwg.mxu0
    %vm1902 = vcmp.ge.f32.partialorder %v1899, 0.0
    %v1903 = vmul.f32 %v1899, 0.01
    %v1904 = vsel %vm1902, %v1899, %v1903
    %1905 = vst [vmem:[#allocation5] sm:$0xff] %v1904
    // Predicated region
    $region38: #{tpu_custom_call.1} parent=1 // pred_check
      _
    $region39: #{tpu_custom_call.1} parent=1 // pred_check_branch
      %1907 = sbr.rel (0) target = $region41
    $region40: #{tpu_custom_call.1} parent=1 // pred_region
      %s1909 = ssub.s32 128, 128
      %1910 = vsyncadd [#allocation4], %s1909
      %s1912 = sshll.u32 [#allocation5], 4
      %s1913 = int_to_ptr.vmem [resolvable:$true] %s1912
      %1915 = dma.vmem_to_hbm [thread:$0]  %s1913, 128, %s8, [#allocation4]
    $region41: #{tpu_custom_call.1} parent=1 // pred_fallthru
      _
    // Predicated region
    $region42: #{tpu_custom_call.1} parent=1 // pred_check
      _
    $region43: #{tpu_custom_call.1} parent=1 // pred_check_branch
      %1917 = sbr.rel (0) target = $region45
    $region44: #{tpu_custom_call.1} parent=1 // pred_region
      %1918 = dma.done [#allocation4], 128
    $region45: #{tpu_custom_call.1} parent=1 // pred_fallthru
      _
    %1919 = vsyncpa [#allocation3], 1
    %1920 = vsyncpa [#allocation4], 1

</llo_original>
